<compile_context>
chip_gen: v7x
topology: tpu7x:2x2x1
jax: 0.10.0
libtpu: 0.0.40
codegen_flags: <defaults>
</compile_context>

<pallas_src>
import functools

import jax
import jax.numpy as jnp
from jax import lax
from jax.experimental import pallas as pl
from jax.experimental.pallas import tpu as pltpu


# ---------------------------------------------------------------------------
# Helpers
# ---------------------------------------------------------------------------

def _round_up(x, m):
    return ((x + m - 1) // m) * m


def _pick_tile(n):
    # Largest stage-2 tile in {512, 256, 128} that still leaves >= 2 row tiles
    # after padding (keeps both v7x TensorCores busy on the "parallel" axis).
    for t in (512, 256):
        if n >= 2 * t:
            return t
    return 128


def _stage1_tile(n_pad):
    # Stage 1 streams only X (W is resident); use the biggest row tile that
    # keeps >= 2 grid steps for the parallel axis.
    for t in (1024, 512, 256):
        if n_pad % t == 0 and n_pad // t >= 2:
            return t
    return min(n_pad, 128)


def _pad2d(x, rows, cols):
    r, c = x.shape
    if r == rows and c == cols:
        return x
    return jnp.pad(x, ((0, rows - r), (0, cols - c)))


def _vmem_cap():
    # Per-core VMEM with 25% headroom for compiler-internal scratch/semaphores
    # (v5e/v6e: 128 MiB physical, v7x: 64 MiB). Fallback is v7x-safe 48 MiB.
    try:
        cap = int(pltpu.get_tpu_info().vmem_capacity_bytes)
    except Exception:  # pragma: no cover - older jax / query unavailable
        cap = 64 << 20
    return (cap * 3) // 4


def _vmem_limit(nbytes, cap):
    # nbytes already counts double buffers; add 25% + 2 MiB slack, clamp to cap.
    return int(min(max(int(nbytes * 1.25) + (2 << 20), 16 << 20), cap))


# ---------------------------------------------------------------------------
# Pallas kernels
# ---------------------------------------------------------------------------

def _support_kernel(*refs, col_offsets):
    """Fused stage 1: o[:, lo_c:hi_c] = x_c @ w_c for each channel c.

    refs = (x_0, w_0, x_1, w_1, ..., o). bf16 MXU inputs, f32 accumulation.
    """
    o_ref = refs[-1]
    nch = len(col_offsets) - 1
    for c in range(nch):
        x_ref = refs[2 * c]
        w_ref = refs[2 * c + 1]
        lo, hi = col_offsets[c], col_offsets[c + 1]
        o_ref[:, lo:hi] = jnp.dot(
            x_ref[...], w_ref[...], preferred_element_type=jnp.float32
        ).astype(o_ref.dtype)


def _aggregate_kernel(adj_ref, s_ref, *rest, col_offsets, l2_flags, resident,
                      block_k):
    """Stage 2: acc[row_tile] = sum_k adj[row_tile, k] @ support[k].

    Epilogue (fused, at k == last): relu on all channels, optional row-wise
    L2 normalization per channel, per-channel output writeback.
    """
    nch = len(l2_flags)
    out_refs = rest[:nch]
    acc_ref = rest[nch]
    k = pl.program_id(1)

    @pl.when(k == 0)
    def _init():
        acc_ref[...] = jnp.zeros_like(acc_ref)

    if resident:
        # support is the full (n, f_total) VMEM-resident block; slice k-tile.
        start = pl.multiple_of(k * block_k, block_k)
        s_blk = s_ref[pl.ds(start, block_k), :]
    else:
        s_blk = s_ref[...]

    acc_ref[...] += jnp.dot(
        adj_ref[...], s_blk, preferred_element_type=jnp.float32
    )

    @pl.when(k == pl.num_programs(1) - 1)
    def _epilogue():
        acc = jnp.maximum(acc_ref[...], 0.0)  # relu (every GraphConvLayer)
        for c in range(nch):
            lo, hi = col_offsets[c], col_offsets[c + 1]
            out = acc[:, lo:hi]
            if l2_flags[c]:
                # F.normalize(dim=1, p=2, eps=1e-12): x / max(||x||, 1e-12)
                ss = jnp.sum(out * out, axis=1, keepdims=True)
                out = out * lax.rsqrt(jnp.maximum(ss, 1e-24))
            out_refs[c][...] = out.astype(out_refs[c].dtype)


# ---------------------------------------------------------------------------
# Fused GraphConv pass over a shared adjacency
# ---------------------------------------------------------------------------

def gcn_fused_pass(channels, adj, tile):
    """One aggregation pass shared by all channels that use the same adj.

    channels: list of dicts {x:(n,f_in), w:(f_in,f_out), l2:bool, out_dtype}.
              All shapes already padded: feature dims to multiples of 128, n to
              a multiple of `tile`.
    Returns:  per-channel outputs [l2?]( relu( adj @ (x_c @ w_c) ) ).
    """
    n = adj.shape[0]
    assert n % tile == 0
    nch = len(channels)
    f_ins = [int(c["x"].shape[1]) for c in channels]
    f_outs = [int(c["w"].shape[1]) for c in channels]
    for f_in, f_out in zip(f_ins, f_outs):
        assert f_in % 128 == 0 and f_out % 128 == 0, (f_in, f_out)

    offs = [0]
    for f in f_outs:
        offs.append(offs[-1] + f)
    col_offsets = tuple(offs)
    f_total = col_offsets[-1]

    cap = _vmem_cap()
    adj = adj.astype(jnp.bfloat16)

    # ---- stage 1: fused support = [x_0 @ w_0 | x_1 @ w_1 | ...] ------------
    tm1 = _stage1_tile(n)
    s1_args, s1_specs = [], []
    s1_bytes = 2 * tm1 * f_total * 2                      # output double-buffer
    for c, f_in, f_out in zip(channels, f_ins, f_outs):
        s1_args += [c["x"].astype(jnp.bfloat16), c["w"].astype(jnp.bfloat16)]
        s1_specs += [
            pl.BlockSpec((tm1, f_in), lambda i: (i, 0)),          # streamed X
            pl.BlockSpec((f_in, f_out), lambda i: (0, 0)),        # resident W
        ]
        s1_bytes += 2 * tm1 * f_in * 2 + 2 * f_in * f_out * 2

    support = pl.pallas_call(
        functools.partial(_support_kernel, col_offsets=col_offsets),
        out_shape=jax.ShapeDtypeStruct((n, f_total), jnp.bfloat16),
        grid_spec=pltpu.PrefetchScalarGridSpec(
            num_scalar_prefetch=0,
            grid=(n // tm1,),
            in_specs=s1_specs,
            out_specs=pl.BlockSpec((tm1, f_total), lambda i: (i, 0)),
        ),
        compiler_params=pltpu.CompilerParams(
            dimension_semantics=("parallel",),
            vmem_limit_bytes=_vmem_limit(s1_bytes, cap),
        ),
    )(*s1_args)

    # ---- stage 2: out_c = epilogue(adj @ support)[:, cols_c] ---------------
    tm = tk = tile
    out_bytes = sum(2 * tm * f * jnp.dtype(c["out_dtype"]).itemsize
                    for c, f in zip(channels, f_outs))
    fixed = 2 * tm * tk * 2 + tm * f_total * 4 + out_bytes
    # Resident support: counted x2 because the (index-invariant) block still
    # gets a second pipeline buffer allocated.
    resident_bytes = fixed + 2 * n * f_total * 2
    resident = int(resident_bytes * 1.25) + (2 << 20) <= cap
    s2_bytes = resident_bytes if resident else fixed + 2 * tk * f_total * 2

    if resident:
        # Full-extent block with invariant index -> DMA'd once per core.
        support_spec = pl.BlockSpec((n, f_total), lambda i, k: (0, 0))
    else:
        support_spec = pl.BlockSpec((tk, f_total), lambda i, k: (k, 0))

    kernel = functools.partial(
        _aggregate_kernel,
        col_offsets=col_offsets,
        l2_flags=tuple(bool(c["l2"]) for c in channels),
        resident=resident,
        block_k=tk,
    )
    outs = pl.pallas_call(
        kernel,
        out_shape=tuple(jax.ShapeDtypeStruct((n, f), c["out_dtype"])
                        for c, f in zip(channels, f_outs)),
        grid_spec=pltpu.PrefetchScalarGridSpec(
            num_scalar_prefetch=0,
            grid=(n // tm, n // tk),
            in_specs=[pl.BlockSpec((tm, tk), lambda i, k: (i, k)),
                      support_spec],
            out_specs=tuple(pl.BlockSpec((tm, f), lambda i, k: (i, 0))
                            for f in f_outs),
            scratch_shapes=[pltpu.VMEM((tm, f_total), jnp.float32)],
        ),
        compiler_params=pltpu.CompilerParams(
            dimension_semantics=("parallel", "arbitrary"),
            vmem_limit_bytes=_vmem_limit(s2_bytes, cap),
        ),
    )(adj, support)
    return list(outs)


# ---------------------------------------------------------------------------
# Parameter init (deterministic, xavier-uniform like the PyTorch module)
# ---------------------------------------------------------------------------

def xavier_uniform(key, shape):
    fan_in, fan_out = shape
    bound = (6.0 / (fan_in + fan_out)) ** 0.5
    return jax.random.uniform(key, shape, jnp.float32, -bound, bound)


def make_params(key, num_sr, num_tg, attr_num1, attr_num2,
                embedding_dim, embedding_dim_attr, layer):
    keys = jax.random.split(key, 5 + layer)
    return {
        "sr_emb": xavier_uniform(keys[0], (num_sr, embedding_dim)),
        "tg_emb": xavier_uniform(keys[1], (num_tg, embedding_dim)),
        # shared-across-sr/tg structural GCN weights (same ModuleList on both)
        "gcn_s_weights": [
            xavier_uniform(keys[5 + i], (embedding_dim, embedding_dim))
            for i in range(layer)
        ],
        "w_a11": xavier_uniform(keys[2], (attr_num1, embedding_dim_attr)),
        "w_a12": xavier_uniform(keys[3], (attr_num2, embedding_dim_attr)),
        "w_a2": xavier_uniform(keys[4], (embedding_dim_attr, embedding_dim_attr)),
    }


# ---------------------------------------------------------------------------
# GCN_Align forward (whole forward under one jit so calls overlap)
# ---------------------------------------------------------------------------

def gcn_align_forward(params, adj_sr, adj_tg, attr_weight_sr, attr_weight_tg):
    num_sr, emb_dim = params["sr_emb"].shape
    num_tg = params["tg_emb"].shape[0]
    attr_dim = params["w_a2"].shape[1]
    n_layers = len(params["gcn_s_weights"])
    assert n_layers >= 1
    ATTR_LAYERS = 2

    # Feature dims padded to lane-dense multiples of 128. Zero padding is
    # exact: zero adj rows/cols contribute 0, relu(0)=0, and the eps in the
    # L2 normalize keeps padded rows at 0.
    d_emb = _round_up(emb_dim, 128)
    d_attr = _round_up(attr_dim, 128)

    def run_graph(adj, ent_emb, attr_w, w_attr_first):
        n_nodes = adj.shape[0]
        tile = _pick_tile(n_nodes)
        n = _round_up(n_nodes, tile)
        # bf16 adjacency cast/pad once per graph (dominant HBM stream).
        adj_p = _pad2d(adj, n, n).astype(jnp.bfloat16)

        a_in = _round_up(attr_w.shape[1], 128)
        x_s = _pad2d(ent_emb, n, d_emb)
        x_a = _pad2d(attr_w, n, a_in)
        attr_weights = [_pad2d(w_attr_first, a_in, d_attr),
                        _pad2d(params["w_a2"], d_attr, d_attr)]

        out_s = out_a = None
        # Fuse the structural and attribute channels wherever both still have a
        # layer left: one adjacency stream serves both channels in that pass.
        for p in range(max(n_layers, ATTR_LAYERS)):
            channels = []
            if p < n_layers:
                last_s = p == n_layers - 1
                channels.append(dict(
                    x=x_s,
                    w=_pad2d(params["gcn_s_weights"][p], d_emb, d_emb),
                    l2=last_s,  # F.normalize fused into the last struct layer
                    out_dtype=jnp.float32 if last_s else jnp.bfloat16))
            if p < ATTR_LAYERS:
                last_a = p == ATTR_LAYERS - 1
                channels.append(dict(
                    x=x_a, w=attr_weights[p], l2=False,
                    out_dtype=jnp.float32 if last_a else jnp.bfloat16))
            outs = gcn_fused_pass(channels, adj_p, tile)
            idx = 0
            if p < n_layers:
                x_s = outs[idx]; idx += 1
                if p == n_layers - 1:
                    out_s = x_s
            if p < ATTR_LAYERS:
                x_a = outs[idx]; idx += 1
                if p == ATTR_LAYERS - 1:
                    out_a = x_a
        return out_s, out_a

    sr_s, sr_a = run_graph(adj_sr, params["sr_emb"], attr_weight_sr,
                           params["w_a11"])
    tg_s, tg_a = run_graph(adj_tg, params["tg_emb"], attr_weight_tg,
                           params["w_a12"])

    # strip padding
    return (sr_s[:num_sr, :emb_dim], tg_s[:num_tg, :emb_dim],
            sr_a[:num_sr, :attr_dim], tg_a[:num_tg, :attr_dim])


# ---------------------------------------------------------------------------
# Pure-JAX f32 reference (loose numerical sanity check)
# ---------------------------------------------------------------------------

def _reference_forward(params, adj_sr, adj_tg, aw_sr, aw_tg):
    def layer(x, w, adj):
        return jnp.maximum(adj @ (x @ w), 0.0)

    def norm(x):
        return x / jnp.maximum(
            jnp.sqrt(jnp.sum(x * x, axis=1, keepdims=True)), 1e-12)

    sr, tg = params["sr_emb"], params["tg_emb"]
    for w in params["gcn_s_weights"]:
        sr = layer(sr, w, adj_sr)
        tg = layer(tg, w, adj_tg)
    sr, tg = norm(sr), norm(tg)
    sa = layer(layer(aw_sr, params["w_a11"], adj_sr), params["w_a2"], adj_sr)
    ta = layer(layer(aw_tg, params["w_a12"], adj_tg), params["w_a2"], adj_tg)
    return sr, tg, sa, ta


# ---------------------------------------------------------------------------
# Main
# ---------------------------------------------------------------------------

if __name__ == "__main__":
    # small, forward-consistent shapes (deliberately not multiples of 128 to
    # exercise the lane-dense padding path)
    num_sr, num_tg = 96, 80
    attr_num1, attr_num2 = 32, 48
    embedding_dim, embedding_dim_attr = 128, 64
    layer = 2

    key = jax.random.PRNGKey(0)
    k_params, k_asr, k_atg, k_wsr, k_wtg = jax.random.split(key, 5)

    params = make_params(k_params, num_sr, num_tg, attr_num1, attr_num2,
                         embedding_dim, embedding_dim_attr, layer)

    # dense row-normalized adjacency (stand-in for the sparse normalized adj)
    def rand_adj(k, n):
        a = jax.random.uniform(k, (n, n), jnp.float32) + jnp.eye(n, dtype=jnp.float32)
        return a / jnp.sum(a, axis=1, keepdims=True)

    adj_sr = rand_adj(k_asr, num_sr)
    adj_tg = rand_adj(k_atg, num_tg)
    attr_weight_sr = jax.random.uniform(k_wsr, (num_sr, attr_num1), jnp.float32)
    attr_weight_tg = jax.random.uniform(k_wtg, (num_tg, attr_num2), jnp.float32)

    fwd = jax.jit(gcn_align_forward)
    outs = fwd(params, adj_sr, adj_tg, attr_weight_sr, attr_weight_tg)
    outs = jax.block_until_ready(outs)

    # sanity: shapes must match the PyTorch module's outputs
    assert outs[0].shape == (num_sr, embedding_dim)
    assert outs[1].shape == (num_tg, embedding_dim)
    assert outs[2].shape == (num_sr, embedding_dim_attr)
    assert outs[3].shape == (num_tg, embedding_dim_attr)

    # loose numerical check vs f32 reference (kernel uses bf16 matmul inputs)
    refs = _reference_forward(params, adj_sr, adj_tg,
                              attr_weight_sr, attr_weight_tg)
    for got, ref in zip(outs, refs):
        err = float(jnp.max(jnp.abs(got.astype(jnp.float32) - ref)))
        scale = float(jnp.max(jnp.abs(ref))) + 1e-6
        assert err <= 0.05 * scale + 1e-3, f"numerical mismatch: {err} vs {scale}"

    print("KERNEL_OK")
</pallas_src>

<mosaic_0001>
module attributes {stable_mosaic.version = 11 : i64} {
  func.func @_support_kernel(%arg0: i32, %arg1: memref<128x128xbf16, #tpu.memory_space<vmem>>, %arg2: memref<128x128xbf16, #tpu.memory_space<vmem>>, %arg3: memref<128x128xbf16, #tpu.memory_space<vmem>>, %arg4: memref<128x128xbf16, #tpu.memory_space<vmem>>, %arg5: memref<128x256xbf16, #tpu.memory_space<vmem>>) attributes {dimension_semantics = [#tpu.dimension_semantics<parallel>], iteration_bounds = array<i64: 1>, scalar_prefetch = 0 : i64, scratch_operands = 0 : i64, tpu.core_type = #tpu.core_type<tc>, window_params = [{transform_indices = @transform_0, window_bounds = array<i64: 128, 128>}, {pipeline_mode = #tpu.pipeline_mode<synchronous>, transform_indices = @transform_1, window_bounds = array<i64: 128, 128>}, {transform_indices = @transform_2, window_bounds = array<i64: 128, 128>}, {pipeline_mode = #tpu.pipeline_mode<synchronous>, transform_indices = @transform_3, window_bounds = array<i64: 128, 128>}, {transform_indices = @transform_4, window_bounds = array<i64: 128, 256>}]} {
    %c0 = arith.constant 0 : index
    %c0_0 = arith.constant 0 : index
    %0 = vector.load %arg1[%c0, %c0_0] : memref<128x128xbf16, #tpu.memory_space<vmem>>, vector<128x128xbf16>
    %c0_1 = arith.constant 0 : index
    %c0_2 = arith.constant 0 : index
    %1 = vector.load %arg2[%c0_1, %c0_2] : memref<128x128xbf16, #tpu.memory_space<vmem>>, vector<128x128xbf16>
    %cst = arith.constant dense<0.000000e+00> : vector<128x128xf32>
    %2 = tpu.matmul %0, %1, %cst {dimension_numbers = #tpu.dot_dimension_numbers<[1], [0], [0], [1], [0, 0, 1, 1], [], []>} : vector<128x128xbf16>, vector<128x128xbf16>, vector<128x128xf32> -> vector<128x128xf32>
    %3 = arith.truncf %2 : vector<128x128xf32> to vector<128x128xbf16>
    %c0_3 = arith.constant 0 : index
    %c0_4 = arith.constant 0 : index
    %4 = vector.load %arg5[%c0_3, %c0_4] : memref<128x256xbf16, #tpu.memory_space<vmem>>, vector<128x128xbf16>
    tpu.vector_store %arg5[%c0_3, %c0_4], %3 {strides = array<i32>} : memref<128x256xbf16, #tpu.memory_space<vmem>>, vector<128x128xbf16>,
    %c0_5 = arith.constant 0 : index
    %c0_6 = arith.constant 0 : index
    %5 = vector.load %arg3[%c0_5, %c0_6] : memref<128x128xbf16, #tpu.memory_space<vmem>>, vector<128x128xbf16>
    %c0_7 = arith.constant 0 : index
    %c0_8 = arith.constant 0 : index
    %6 = vector.load %arg4[%c0_7, %c0_8] : memref<128x128xbf16, #tpu.memory_space<vmem>>, vector<128x128xbf16>
    %cst_9 = arith.constant dense<0.000000e+00> : vector<128x128xf32>
    %7 = tpu.matmul %5, %6, %cst_9 {dimension_numbers = #tpu.dot_dimension_numbers<[1], [0], [0], [1], [0, 0, 1, 1], [], []>} : vector<128x128xbf16>, vector<128x128xbf16>, vector<128x128xf32> -> vector<128x128xf32>
    %8 = arith.truncf %7 : vector<128x128xf32> to vector<128x128xbf16>
    %c0_10 = arith.constant 0 : index
    %c128 = arith.constant 128 : index
    %9 = vector.load %arg5[%c0_10, %c128] : memref<128x256xbf16, #tpu.memory_space<vmem>>, vector<128x128xbf16>
    tpu.vector_store %arg5[%c0_10, %c128], %8 {strides = array<i32>} : memref<128x256xbf16, #tpu.memory_space<vmem>>, vector<128x128xbf16>,
    return
  }
  func.func @transform_0(%arg0: i32) -> (i32, i32) {
    %c0_i32 = arith.constant 0 : i32
    %c0_i32_0 = arith.constant 0 : i32
    return %arg0, %c0_i32 : i32, i32
  }
  func.func @transform_1(%arg0: i32) -> (i32, i32) {
    %c0_i32 = arith.constant 0 : i32
    %c0_i32_0 = arith.constant 0 : i32
    %c0_i32_1 = arith.constant 0 : i32
    return %c0_i32, %c0_i32_0 : i32, i32
  }
  func.func @transform_2(%arg0: i32) -> (i32, i32) {
    %c0_i32 = arith.constant 0 : i32
    %c0_i32_0 = arith.constant 0 : i32
    return %arg0, %c0_i32 : i32, i32
  }
  func.func @transform_3(%arg0: i32) -> (i32, i32) {
    %c0_i32 = arith.constant 0 : i32
    %c0_i32_0 = arith.constant 0 : i32
    %c0_i32_1 = arith.constant 0 : i32
    return %c0_i32, %c0_i32_0 : i32, i32
  }
  func.func @transform_4(%arg0: i32) -> (i32, i32) {
    %c0_i32 = arith.constant 0 : i32
    %c0_i32_0 = arith.constant 0 : i32
    return %arg0, %c0_i32 : i32, i32
  }
}

module attributes {stable_mosaic.version = 11 : i64} {
  func.func @_aggregate_kernel(%arg0: i32, %arg1: i32, %arg2: memref<128x128xbf16, #tpu.memory_space<vmem>>, %arg3: memref<128x256xbf16, #tpu.memory_space<vmem>>, %arg4: memref<128x128xf32, #tpu.memory_space<vmem>>, %arg5: memref<128x128xf32, #tpu.memory_space<vmem>>, %arg6: memref<128x256xf32, #tpu.memory_space<vmem>>) attributes {dimension_semantics = [#tpu.dimension_semantics<parallel>, #tpu.dimension_semantics<arbitrary>], iteration_bounds = array<i64: 1, 1>, scalar_prefetch = 0 : i64, scratch_operands = 1 : i64, tpu.core_type = #tpu.core_type<tc>, window_params = [{transform_indices = @transform_0, window_bounds = array<i64: 128, 128>}, {pipeline_mode = #tpu.pipeline_mode<synchronous>, transform_indices = @transform_1, window_bounds = array<i64: 128, 256>}, {transform_indices = @transform_2, window_bounds = array<i64: 128, 128>}, {transform_indices = @transform_3, window_bounds = array<i64: 128, 128>}]} {
    %c0_i32 = arith.constant 0 : i32
    %0 = arith.cmpi eq, %arg1, %c0_i32 : i32
    %1 = arith.extui %0 : i1 to i32
    %c0_i32_0 = arith.constant 0 : i32
    %2 = arith.cmpi ne, %1, %c0_i32_0 : i32
    scf.if %2 {
      %cst_9 = arith.constant 0.000000e+00 : f32
      %15 = vector.broadcast %cst_9 : f32 to vector<128x256xf32>
      %c0_10 = arith.constant 0 : index
      %c0_11 = arith.constant 0 : index
      %16 = vector.load %arg6[%c0_10, %c0_11] : memref<128x256xf32, #tpu.memory_space<vmem>>, vector<128x256xf32>
      tpu.vector_store %arg6[%c0_10, %c0_11], %15 {strides = array<i32>} : memref<128x256xf32, #tpu.memory_space<vmem>>, vector<128x256xf32>,
    } else {
    }
    %c128_i32 = arith.constant 128 : i32
    %3 = arith.muli %arg1, %c128_i32 : i32
    %4 = tpu.assume_multiple %3, 128 : i32
    %5 = arith.index_cast %4 : i32 to index
    %c0 = arith.constant 0 : index
    %6 = vector.load %arg3[%5, %c0] : memref<128x256xbf16, #tpu.memory_space<vmem>>, vector<128x256xbf16>
    %c0_1 = arith.constant 0 : index
    %c0_2 = arith.constant 0 : index
    %7 = vector.load %arg6[%c0_1, %c0_2] : memref<128x256xf32, #tpu.memory_space<vmem>>, vector<128x256xf32>
    %c0_3 = arith.constant 0 : index
    %c0_4 = arith.constant 0 : index
    %8 = vector.load %arg2[%c0_3, %c0_4] : memref<128x128xbf16, #tpu.memory_space<vmem>>, vector<128x128xbf16>
    %cst = arith.constant dense<0.000000e+00> : vector<128x256xf32>
    %9 = tpu.matmul %8, %6, %cst {dimension_numbers = #tpu.dot_dimension_numbers<[1], [0], [0], [1], [0, 0, 1, 1], [], []>} : vector<128x128xbf16>, vector<128x256xbf16>, vector<128x256xf32> -> vector<128x256xf32>
    %10 = arith.addf %7, %9 : vector<128x256xf32>
    %c0_5 = arith.constant 0 : index
    %c0_6 = arith.constant 0 : index
    %11 = vector.load %arg6[%c0_5, %c0_6] : memref<128x256xf32, #tpu.memory_space<vmem>>, vector<128x256xf32>
    tpu.vector_store %arg6[%c0_5, %c0_6], %10 {strides = array<i32>} : memref<128x256xf32, #tpu.memory_space<vmem>>, vector<128x256xf32>,
    %c0_i32_7 = arith.constant 0 : i32
    %12 = arith.cmpi eq, %arg1, %c0_i32_7 : i32
    %13 = arith.extui %12 : i1 to i32
    %c0_i32_8 = arith.constant 0 : i32
    %14 = arith.cmpi ne, %13, %c0_i32_8 : i32
    scf.if %14 {
      %c0_9 = arith.constant 0 : index
      %c0_10 = arith.constant 0 : index
      %15 = vector.load %arg6[%c0_9, %c0_10] : memref<128x256xf32, #tpu.memory_space<vmem>>, vector<128x256xf32>
      %cst_11 = arith.constant 0.000000e+00 : f32
      %16 = vector.broadcast %cst_11 : f32 to vector<128x256xf32>
      %17 = arith.maximumf %15, %16 : vector<128x256xf32>
      %18 = vector.extract_strided_slice %17 {offsets = [0, 0], sizes = [128, 128], strides = [1, 1]} : vector<128x256xf32> to vector<128x128xf32>
      %19 = arith.mulf %18, %18 : vector<128x128xf32>
      %cst_12 = arith.constant dense<0.000000e+00> : vector<128xf32>
      %20 = vector.multi_reduction <add>, %19, %cst_12 [1] : vector<128x128xf32> to vector<128xf32>
      %21 = vector.shape_cast %20 : vector<128xf32> to vector<128x1xf32>
      %cst_13 = arith.constant 1.000000e-24 : f32
      %22 = vector.broadcast %cst_13 : f32 to vector<128x1xf32>
      %23 = arith.maximumf %21, %22 : vector<128x1xf32>
      %24 = math.rsqrt %23 : vector<128x1xf32>
      %25 = vector.broadcast %24 : vector<128x1xf32> to vector<128x128xf32>
      %26 = arith.mulf %18, %25 : vector<128x128xf32>
      %c0_14 = arith.constant 0 : index
      %c0_15 = arith.constant 0 : index
      %27 = vector.load %arg4[%c0_14, %c0_15] : memref<128x128xf32, #tpu.memory_space<vmem>>, vector<128x128xf32>
      tpu.vector_store %arg4[%c0_14, %c0_15], %26 {strides = array<i32>} : memref<128x128xf32, #tpu.memory_space<vmem>>, vector<128x128xf32>,
      %28 = vector.extract_strided_slice %17 {offsets = [0, 128], sizes = [128, 128], strides = [1, 1]} : vector<128x256xf32> to vector<128x128xf32>
      %c0_16 = arith.constant 0 : index
      %c0_17 = arith.constant 0 : index
      %29 = vector.load %arg5[%c0_16, %c0_17] : memref<128x128xf32, #tpu.memory_space<vmem>>, vector<128x128xf32>
      tpu.vector_store %arg5[%c0_16, %c0_17], %28 {strides = array<i32>} : memref<128x128xf32, #tpu.memory_space<vmem>>, vector<128x128xf32>,
    } else {
    }
    return
  }
  func.func @transform_0(%arg0: i32, %arg1: i32) -> (i32, i32) {
    %c0_i32 = arith.constant 0 : i32
    return %arg0, %arg1 : i32, i32
  }
  func.func @transform_1(%arg0: i32, %arg1: i32) -> (i32, i32) {
    %c0_i32 = arith.constant 0 : i32
    %c0_i32_0 = arith.constant 0 : i32
    %c0_i32_1 = arith.constant 0 : i32
    return %c0_i32, %c0_i32_0 : i32, i32
  }
  func.func @transform_2(%arg0: i32, %arg1: i32) -> (i32, i32) {
    %c0_i32 = arith.constant 0 : i32
    %c0_i32_0 = arith.constant 0 : i32
    return %arg0, %c0_i32 : i32, i32
  }
  func.func @transform_3(%arg0: i32, %arg1: i32) -> (i32, i32) {
    %c0_i32 = arith.constant 0 : i32
    %c0_i32_0 = arith.constant 0 : i32
    return %arg0, %c0_i32 : i32, i32
  }
}

module attributes {stable_mosaic.version = 11 : i64} {
  func.func @_aggregate_kernel(%arg0: i32, %arg1: i32, %arg2: memref<128x128xbf16, #tpu.memory_space<vmem>>, %arg3: memref<128x256xbf16, #tpu.memory_space<vmem>>, %arg4: memref<128x128xbf16, #tpu.memory_space<vmem>>, %arg5: memref<128x128xbf16, #tpu.memory_space<vmem>>, %arg6: memref<128x256xf32, #tpu.memory_space<vmem>>) attributes {dimension_semantics = [#tpu.dimension_semantics<parallel>, #tpu.dimension_semantics<arbitrary>], iteration_bounds = array<i64: 1, 1>, scalar_prefetch = 0 : i64, scratch_operands = 1 : i64, tpu.core_type = #tpu.core_type<tc>, window_params = [{transform_indices = @transform_0, window_bounds = array<i64: 128, 128>}, {pipeline_mode = #tpu.pipeline_mode<synchronous>, transform_indices = @transform_1, window_bounds = array<i64: 128, 256>}, {transform_indices = @transform_2, window_bounds = array<i64: 128, 128>}, {transform_indices = @transform_3, window_bounds = array<i64: 128, 128>}]} {
    %c0_i32 = arith.constant 0 : i32
    %0 = arith.cmpi eq, %arg1, %c0_i32 : i32
    %1 = arith.extui %0 : i1 to i32
    %c0_i32_0 = arith.constant 0 : i32
    %2 = arith.cmpi ne, %1, %c0_i32_0 : i32
    scf.if %2 {
      %cst_9 = arith.constant 0.000000e+00 : f32
      %15 = vector.broadcast %cst_9 : f32 to vector<128x256xf32>
      %c0_10 = arith.constant 0 : index
      %c0_11 = arith.constant 0 : index
      %16 = vector.load %arg6[%c0_10, %c0_11] : memref<128x256xf32, #tpu.memory_space<vmem>>, vector<128x256xf32>
      tpu.vector_store %arg6[%c0_10, %c0_11], %15 {strides = array<i32>} : memref<128x256xf32, #tpu.memory_space<vmem>>, vector<128x256xf32>,
    } else {
    }
    %c128_i32 = arith.constant 128 : i32
    %3 = arith.muli %arg1, %c128_i32 : i32
    %4 = tpu.assume_multiple %3, 128 : i32
    %5 = arith.index_cast %4 : i32 to index
    %c0 = arith.constant 0 : index
    %6 = vector.load %arg3[%5, %c0] : memref<128x256xbf16, #tpu.memory_space<vmem>>, vector<128x256xbf16>
    %c0_1 = arith.constant 0 : index
    %c0_2 = arith.constant 0 : index
    %7 = vector.load %arg6[%c0_1, %c0_2] : memref<128x256xf32, #tpu.memory_space<vmem>>, vector<128x256xf32>
    %c0_3 = arith.constant 0 : index
    %c0_4 = arith.constant 0 : index
    %8 = vector.load %arg2[%c0_3, %c0_4] : memref<128x128xbf16, #tpu.memory_space<vmem>>, vector<128x128xbf16>
    %cst = arith.constant dense<0.000000e+00> : vector<128x256xf32>
    %9 = tpu.matmul %8, %6, %cst {dimension_numbers = #tpu.dot_dimension_numbers<[1], [0], [0], [1], [0, 0, 1, 1], [], []>} : vector<128x128xbf16>, vector<128x256xbf16>, vector<128x256xf32> -> vector<128x256xf32>
    %10 = arith.addf %7, %9 : vector<128x256xf32>
    %c0_5 = arith.constant 0 : index
    %c0_6 = arith.constant 0 : index
    %11 = vector.load %arg6[%c0_5, %c0_6] : memref<128x256xf32, #tpu.memory_space<vmem>>, vector<128x256xf32>
    tpu.vector_store %arg6[%c0_5, %c0_6], %10 {strides = array<i32>} : memref<128x256xf32, #tpu.memory_space<vmem>>, vector<128x256xf32>,
    %c0_i32_7 = arith.constant 0 : i32
    %12 = arith.cmpi eq, %arg1, %c0_i32_7 : i32
    %13 = arith.extui %12 : i1 to i32
    %c0_i32_8 = arith.constant 0 : i32
    %14 = arith.cmpi ne, %13, %c0_i32_8 : i32
    scf.if %14 {
      %c0_9 = arith.constant 0 : index
      %c0_10 = arith.constant 0 : index
      %15 = vector.load %arg6[%c0_9, %c0_10] : memref<128x256xf32, #tpu.memory_space<vmem>>, vector<128x256xf32>
      %cst_11 = arith.constant 0.000000e+00 : f32
      %16 = vector.broadcast %cst_11 : f32 to vector<128x256xf32>
      %17 = arith.maximumf %15, %16 : vector<128x256xf32>
      %18 = vector.extract_strided_slice %17 {offsets = [0, 0], sizes = [128, 128], strides = [1, 1]} : vector<128x256xf32> to vector<128x128xf32>
      %19 = arith.truncf %18 : vector<128x128xf32> to vector<128x128xbf16>
      %c0_12 = arith.constant 0 : index
      %c0_13 = arith.constant 0 : index
      %20 = vector.load %arg4[%c0_12, %c0_13] : memref<128x128xbf16, #tpu.memory_space<vmem>>, vector<128x128xbf16>
      tpu.vector_store %arg4[%c0_12, %c0_13], %19 {strides = array<i32>} : memref<128x128xbf16, #tpu.memory_space<vmem>>, vector<128x128xbf16>,
      %21 = vector.extract_strided_slice %17 {offsets = [0, 128], sizes = [128, 128], strides = [1, 1]} : vector<128x256xf32> to vector<128x128xf32>
      %22 = arith.truncf %21 : vector<128x128xf32> to vector<128x128xbf16>
      %c0_14 = arith.constant 0 : index
      %c0_15 = arith.constant 0 : index
      %23 = vector.load %arg5[%c0_14, %c0_15] : memref<128x128xbf16, #tpu.memory_space<vmem>>, vector<128x128xbf16>
      tpu.vector_store %arg5[%c0_14, %c0_15], %22 {strides = array<i32>} : memref<128x128xbf16, #tpu.memory_space<vmem>>, vector<128x128xbf16>,
    } else {
    }
    return
  }
  func.func @transform_0(%arg0: i32, %arg1: i32) -> (i32, i32) {
    %c0_i32 = arith.constant 0 : i32
    return %arg0, %arg1 : i32, i32
  }
  func.func @transform_1(%arg0: i32, %arg1: i32) -> (i32, i32) {
    %c0_i32 = arith.constant 0 : i32
    %c0_i32_0 = arith.constant 0 : i32
    %c0_i32_1 = arith.constant 0 : i32
    return %c0_i32, %c0_i32_0 : i32, i32
  }
  func.func @transform_2(%arg0: i32, %arg1: i32) -> (i32, i32) {
    %c0_i32 = arith.constant 0 : i32
    %c0_i32_0 = arith.constant 0 : i32
    return %arg0, %c0_i32 : i32, i32
  }
  func.func @transform_3(%arg0: i32, %arg1: i32) -> (i32, i32) {
    %c0_i32 = arith.constant 0 : i32
    %c0_i32_0 = arith.constant 0 : i32
    return %arg0, %c0_i32 : i32, i32
  }
}

</mosaic_0001>

<llo_original>
// kernel: gcn_align_forward.12
$region0: #{gcn_align_forward.12}
  #allocation0 [shape = 'u32[]', space=smem, size = 0x4, offset = 0x4, fixed_abs, tag = 'smem constant byte address 0x4 - core index']
  #allocation1 [shape = 'u32[144,128]{1,0:T(1,128)}', space=vmem, size = 0x12000, scoped, tag = 'internal scratch']
  %s0 = inlined_call_operand.vmem [shape: bf16[128,128], index: 0, kind: input, shape index: {}]
  %s1 = inlined_call_operand.vmem [shape: bf16[128,128], index: 1, kind: input, shape index: {}]
  %s2 = inlined_call_operand.vmem [shape: bf16[128,128], index: 2, kind: input, shape index: {}]
  %s3 = inlined_call_operand.vmem [shape: bf16[128,128], index: 3, kind: input, shape index: {}]
  %s4 = inlined_call_operand.vmem [shape: bf16[128,256], index: 4, kind: output, shape index: {}]
  %s5 = sld [smem:[#allocation0]]
  $region26: #{gcn_align_forward.12} parent=0
    _
  %s7 = ssub.s32 1, %s5
  %s8 = scalar_select 0, %s7, %s5
  // Predicated region
  $region2: #{gcn_align_forward.12} parent=0 // pred_check
    _
  $region3: #{gcn_align_forward.12} parent=0 // pred_check_branch
    %10 = sbr.rel (0) target = $region5
  $region4: #{gcn_align_forward.12} parent=0 // pred_region
    _
  $region5: #{gcn_align_forward.12} parent=0 // pred_fallthru
    _
  // Predicated region
  $region6: #{gcn_align_forward.12} parent=0 // pred_check
    _
  $region7: #{gcn_align_forward.12} parent=0 // pred_check_branch
    %12 = sbr.rel (0) target = $region9
  $region8: #{gcn_align_forward.12} parent=0 // pred_region
    _
  $region9: #{gcn_align_forward.12} parent=0 // pred_fallthru
    _
  // Predicated region
  $region10: #{gcn_align_forward.12} parent=0 // pred_check
    _
  $region11: #{gcn_align_forward.12} parent=0 // pred_check_branch
    %14 = sbr.rel (0) target = $region13
  $region12: #{gcn_align_forward.12} parent=0 // pred_region
    _
  $region13: #{gcn_align_forward.12} parent=0 // pred_fallthru
    _
  // Predicated region
  $region14: #{gcn_align_forward.12} parent=0 // pred_check
    _
  $region15: #{gcn_align_forward.12} parent=0 // pred_check_branch
    %16 = sbr.rel (0) target = $region17
  $region16: #{gcn_align_forward.12} parent=0 // pred_region
    _
  $region17: #{gcn_align_forward.12} parent=0 // pred_fallthru
    _
  %v18 = vld [vmem:[%s0] sm:$0xf]
  %v19 = vld [vmem:[%s0 + $0x4] sm:$0xf]
  %v20 = vld [vmem:[%s0 + $0x8] sm:$0xf]
  %v21 = vld [vmem:[%s0 + $0xc] sm:$0xf]
  %v22 = vld [vmem:[%s0 + $0x10] sm:$0xf]
  %v23 = vld [vmem:[%s0 + $0x14] sm:$0xf]
  %v24 = vld [vmem:[%s0 + $0x18] sm:$0xf]
  %v25 = vld [vmem:[%s0 + $0x1c] sm:$0xf]
  %v26 = vld [vmem:[%s0 + $0x20] sm:$0xf]
  %v27 = vld [vmem:[%s0 + $0x24] sm:$0xf]
  %v28 = vld [vmem:[%s0 + $0x28] sm:$0xf]
  %v29 = vld [vmem:[%s0 + $0x2c] sm:$0xf]
  %v30 = vld [vmem:[%s0 + $0x30] sm:$0xf]
  %v31 = vld [vmem:[%s0 + $0x34] sm:$0xf]
  %v32 = vld [vmem:[%s0 + $0x38] sm:$0xf]
  %v33 = vld [vmem:[%s0 + $0x3c] sm:$0xf]
  %v34 = vld [vmem:[%s1] sm:$0xf]
  %v35 = vld [vmem:[%s1 + $0x4] sm:$0xf]
  %v36 = vld [vmem:[%s1 + $0x8] sm:$0xf]
  %v37 = vld [vmem:[%s1 + $0xc] sm:$0xf]
  %v38 = vld [vmem:[%s1 + $0x10] sm:$0xf]
  %v39 = vld [vmem:[%s1 + $0x14] sm:$0xf]
  %v40 = vld [vmem:[%s1 + $0x18] sm:$0xf]
  %v41 = vld [vmem:[%s1 + $0x1c] sm:$0xf]
  %v42 = vld [vmem:[%s1 + $0x20] sm:$0xf]
  %v43 = vld [vmem:[%s1 + $0x24] sm:$0xf]
  %v44 = vld [vmem:[%s1 + $0x28] sm:$0xf]
  %v45 = vld [vmem:[%s1 + $0x2c] sm:$0xf]
  %v46 = vld [vmem:[%s1 + $0x30] sm:$0xf]
  %v47 = vld [vmem:[%s1 + $0x34] sm:$0xf]
  %v48 = vld [vmem:[%s1 + $0x38] sm:$0xf]
  %v49 = vld [vmem:[%s1 + $0x3c] sm:$0xf]
  %v66 = vunpack.c.l.b16 %v18
  %v67 = vunpack.c.l.b16 %v19
  %v68 = vunpack.c.l.b16 %v20
  %v69 = vunpack.c.l.b16 %v21
  %v70 = vunpack.c.l.b16 %v22
  %v71 = vunpack.c.l.b16 %v23
  %v72 = vunpack.c.l.b16 %v24
  %v73 = vunpack.c.l.b16 %v25
  %v74 = vunpack.c.l.b16 %v26
  %v75 = vunpack.c.l.b16 %v27
  %v76 = vunpack.c.l.b16 %v28
  %v77 = vunpack.c.l.b16 %v29
  %v78 = vunpack.c.l.b16 %v30
  %v79 = vunpack.c.l.b16 %v31
  %v80 = vunpack.c.l.b16 %v32
  %v81 = vunpack.c.l.b16 %v33
  %v82 = vpack.c.b16 %v67, %v66
  %v83 = vpack.c.b16 %v69, %v68
  %v84 = vpack.c.b16 %v71, %v70
  %v85 = vpack.c.b16 %v73, %v72
  %v86 = vpack.c.b16 %v75, %v74
  %v87 = vpack.c.b16 %v77, %v76
  %v88 = vpack.c.b16 %v79, %v78
  %v89 = vpack.c.b16 %v81, %v80
  %v114 = vunpack.c.l.b16 %v34
  %v115 = vunpack.c.l.b16 %v35
  %v116 = vunpack.c.l.b16 %v36
  %v117 = vunpack.c.l.b16 %v37
  %v118 = vunpack.c.l.b16 %v38
  %v119 = vunpack.c.l.b16 %v39
  %v120 = vunpack.c.l.b16 %v40
  %v121 = vunpack.c.l.b16 %v41
  %v122 = vunpack.c.l.b16 %v42
  %v123 = vunpack.c.l.b16 %v43
  %v124 = vunpack.c.l.b16 %v44
  %v125 = vunpack.c.l.b16 %v45
  %v126 = vunpack.c.l.b16 %v46
  %v127 = vunpack.c.l.b16 %v47
  %v128 = vunpack.c.l.b16 %v48
  %v129 = vunpack.c.l.b16 %v49
  %v130 = vpack.c.b16 %v115, %v114
  %v131 = vpack.c.b16 %v117, %v116
  %v132 = vpack.c.b16 %v119, %v118
  %v133 = vpack.c.b16 %v121, %v120
  %v134 = vpack.c.b16 %v123, %v122
  %v135 = vpack.c.b16 %v125, %v124
  %v136 = vpack.c.b16 %v127, %v126
  %v137 = vpack.c.b16 %v129, %v128
  %146 = vmatprep.subr.bf16.mxu0 0
  %147 = vmatpush1.bf16.msra.mxu0 %v130
  %148 = vmatprep.subr.bf16.mxu0 0
  %149 = vmatpush1.bf16.msra.mxu0 %v131
  %150 = vmatprep.subr.bf16.mxu0 0
  %151 = vmatpush1.bf16.msra.mxu0 %v132
  %152 = vmatprep.subr.bf16.mxu0 0
  %153 = vmatpush1.bf16.msra.mxu0 %v133
  %154 = vmatprep.subr.bf16.mxu0 0
  %155 = vmatpush1.bf16.msra.mxu0 %v134
  %156 = vmatprep.subr.bf16.mxu0 0
  %157 = vmatpush1.bf16.msra.mxu0 %v135
  %158 = vmatprep.subr.bf16.mxu0 0
  %159 = vmatpush1.bf16.msra.mxu0 %v136
  %160 = vmatprep.subr.bf16.mxu0 0
  %161 = vmatpush1.bf16.msra.mxu0 %v137
  %162 = vmatprep.subr.bf16.mxu0 0
  %163 = vmatpush1.bf16.msra.mxu0 0
  %164 = vmatprep.subr.bf16.mxu0 0
  %165 = vmatpush1.bf16.msra.mxu0 0
  %166 = vmatprep.subr.bf16.mxu0 0
  %167 = vmatpush1.bf16.msra.mxu0 0
  %168 = vmatprep.subr.bf16.mxu0 0
  %169 = vmatpush1.bf16.msra.mxu0 0
  %170 = vmatprep.subr.bf16.mxu0 0
  %171 = vmatpush1.bf16.msra.mxu0 0
  %172 = vmatprep.subr.bf16.mxu0 0
  %173 = vmatpush1.bf16.msra.mxu0 0
  %174 = vmatprep.subr.bf16.mxu0 0
  %175 = vmatpush1.bf16.msra.mxu0 0
  %176 = vmatprep.subr.bf16.mxu0 0
  %177 = vmatpush1.bf16.msra.mxu0 0
  %178 = vmatprep.mubr.bf16.mxu0 0
  %179 = vmatmul.mubr.bf16.gmra.mrb[0].mxu0 %v82
  %v180 = vpop.f32.mrb[0].mxu0
  %v181 = vadd.f32 0.0, %v180
  %v182 = vpop.f32.mrb[0].mxu0
  %v183 = vpop.f32.mrb[0].mxu0
  %v184 = vadd.f32 0.0, %v183
  %v185 = vpop.f32.mrb[0].mxu0
  %186 = vmatprep.mubr.bf16.mxu0 0
  %187 = vmatmul.mubr.bf16.gmra.mrb[0].mxu0 %v83
  %v188 = vpop.f32.mrb[0].mxu0
  %v189 = vadd.f32 0.0, %v188
  %v190 = vpop.f32.mrb[0].mxu0
  %v191 = vpop.f32.mrb[0].mxu0
  %v192 = vadd.f32 0.0, %v191
  %v193 = vpop.f32.mrb[0].mxu0
  %194 = vmatprep.mubr.bf16.mxu0 0
  %195 = vmatmul.mubr.bf16.gmra.mrb[0].mxu0 %v84
  %v196 = vpop.f32.mrb[0].mxu0
  %v197 = vadd.f32 0.0, %v196
  %v198 = vpop.f32.mrb[0].mxu0
  %v199 = vpop.f32.mrb[0].mxu0
  %v200 = vadd.f32 0.0, %v199
  %v201 = vpop.f32.mrb[0].mxu0
  %202 = vmatprep.mubr.bf16.mxu0 0
  %203 = vmatmul.mubr.bf16.gmra.mrb[0].mxu0 %v85
  %v204 = vpop.f32.mrb[0].mxu0
  %v205 = vadd.f32 0.0, %v204
  %v206 = vpop.f32.mrb[0].mxu0
  %v207 = vpop.f32.mrb[0].mxu0
  %v208 = vadd.f32 0.0, %v207
  %v209 = vpop.f32.mrb[0].mxu0
  %210 = vmatprep.mubr.bf16.mxu0 0
  %211 = vmatmul.mubr.bf16.gmra.mrb[0].mxu0 %v86
  %v212 = vpop.f32.mrb[0].mxu0
  %v213 = vadd.f32 0.0, %v212
  %v214 = vpop.f32.mrb[0].mxu0
  %v215 = vpop.f32.mrb[0].mxu0
  %v216 = vadd.f32 0.0, %v215
  %v217 = vpop.f32.mrb[0].mxu0
  %218 = vmatprep.mubr.bf16.mxu0 0
  %219 = vmatmul.mubr.bf16.gmra.mrb[0].mxu0 %v87
  %v220 = vpop.f32.mrb[0].mxu0
  %v221 = vadd.f32 0.0, %v220
  %v222 = vpop.f32.mrb[0].mxu0
  %v223 = vpop.f32.mrb[0].mxu0
  %v224 = vadd.f32 0.0, %v223
  %v225 = vpop.f32.mrb[0].mxu0
  %226 = vmatprep.mubr.bf16.mxu0 0
  %227 = vmatmul.mubr.bf16.gmra.mrb[0].mxu0 %v88
  %v228 = vpop.f32.mrb[0].mxu0
  %v229 = vadd.f32 0.0, %v228
  %v230 = vpop.f32.mrb[0].mxu0
  %v231 = vpop.f32.mrb[0].mxu0
  %v232 = vadd.f32 0.0, %v231
  %v233 = vpop.f32.mrb[0].mxu0
  %234 = vmatprep.mubr.bf16.mxu0 0
  %235 = vmatmul.mubr.bf16.gmra.mrb[0].mxu0 %v89
  %v236 = vpop.f32.mrb[0].mxu0
  %v237 = vadd.f32 0.0, %v236
  %v238 = vpop.f32.mrb[0].mxu0
  %v239 = vpop.f32.mrb[0].mxu0
  %v240 = vadd.f32 0.0, %v239
  %v241 = vpop.f32.mrb[0].mxu0
  %242 = vdwg.mxu0
  %v243 = vpack.c.bf16 %v184, %v181
  %v244 = vpack.c.bf16 %v192, %v189
  %v245 = vpack.c.bf16 %v200, %v197
  %v246 = vpack.c.bf16 %v208, %v205
  %v247 = vpack.c.bf16 %v216, %v213
  %v248 = vpack.c.bf16 %v224, %v221
  %v249 = vpack.c.bf16 %v232, %v229
  %v250 = vpack.c.bf16 %v240, %v237
  %v259 = vunpack.c.l.b16 %v243
  %v260 = vunpack.c.h.b16 %v243
  %v261 = vunpack.c.l.b16 %v244
  %v262 = vunpack.c.h.b16 %v244
  %v263 = vunpack.c.l.b16 %v245
  %v264 = vunpack.c.h.b16 %v245
  %v265 = vunpack.c.l.b16 %v246
  %v266 = vunpack.c.h.b16 %v246
  %v267 = vunpack.c.l.b16 %v247
  %v268 = vunpack.c.h.b16 %v247
  %v269 = vunpack.c.l.b16 %v248
  %v270 = vunpack.c.h.b16 %v248
  %v271 = vunpack.c.l.b16 %v249
  %v272 = vunpack.c.h.b16 %v249
  %v273 = vunpack.c.l.b16 %v250
  %v274 = vunpack.c.h.b16 %v250
  %v275 = vpack.c.b16 %v259, %v259
  %v276 = vpack.c.b16 %v260, %v260
  %v277 = vpack.c.b16 %v261, %v261
  %v278 = vpack.c.b16 %v262, %v262
  %v279 = vpack.c.b16 %v263, %v263
  %v280 = vpack.c.b16 %v264, %v264
  %v281 = vpack.c.b16 %v265, %v265
  %v282 = vpack.c.b16 %v266, %v266
  %v283 = vpack.c.b16 %v267, %v267
  %v284 = vpack.c.b16 %v268, %v268
  %v285 = vpack.c.b16 %v269, %v269
  %v286 = vpack.c.b16 %v270, %v270
  %v287 = vpack.c.b16 %v271, %v271
  %v288 = vpack.c.b16 %v272, %v272
  %v289 = vpack.c.b16 %v273, %v273
  %v290 = vpack.c.b16 %v274, %v274
  %307 = vst [vmem:[%s4] sm:$0xf] %v275
  %308 = vst [vmem:[%s4 + $0x8] sm:$0xf] %v276
  %309 = vst [vmem:[%s4 + $0x10] sm:$0xf] %v277
  %310 = vst [vmem:[%s4 + $0x18] sm:$0xf] %v278
  %311 = vst [vmem:[%s4 + $0x20] sm:$0xf] %v279
  %312 = vst [vmem:[%s4 + $0x28] sm:$0xf] %v280
  %313 = vst [vmem:[%s4 + $0x30] sm:$0xf] %v281
  %314 = vst [vmem:[%s4 + $0x38] sm:$0xf] %v282
  %315 = vst [vmem:[%s4 + $0x40] sm:$0xf] %v283
  %316 = vst [vmem:[%s4 + $0x48] sm:$0xf] %v284
  %317 = vst [vmem:[%s4 + $0x50] sm:$0xf] %v285
  %318 = vst [vmem:[%s4 + $0x58] sm:$0xf] %v286
  %319 = vst [vmem:[%s4 + $0x60] sm:$0xf] %v287
  %320 = vst [vmem:[%s4 + $0x68] sm:$0xf] %v288
  %321 = vst [vmem:[%s4 + $0x70] sm:$0xf] %v289
  %322 = vst [vmem:[%s4 + $0x78] sm:$0xf] %v290
  %v323 = vld [vmem:[%s2] sm:$0xf]
  %v324 = vld [vmem:[%s2 + $0x4] sm:$0xf]
  %v325 = vld [vmem:[%s2 + $0x8] sm:$0xf]
  %v326 = vld [vmem:[%s2 + $0xc] sm:$0xf]
  %v327 = vld [vmem:[%s2 + $0x10] sm:$0xf]
  %v328 = vld [vmem:[%s2 + $0x14] sm:$0xf]
  %v329 = vld [vmem:[%s2 + $0x18] sm:$0xf]
  %v330 = vld [vmem:[%s2 + $0x1c] sm:$0xf]
  %v331 = vld [vmem:[%s2 + $0x20] sm:$0xf]
  %v332 = vld [vmem:[%s2 + $0x24] sm:$0xf]
  %v333 = vld [vmem:[%s2 + $0x28] sm:$0xf]
  %v334 = vld [vmem:[%s2 + $0x2c] sm:$0xf]
  %v335 = vld [vmem:[%s2 + $0x30] sm:$0xf]
  %v336 = vld [vmem:[%s2 + $0x34] sm:$0xf]
  %v337 = vld [vmem:[%s2 + $0x38] sm:$0xf]
  %v338 = vld [vmem:[%s2 + $0x3c] sm:$0xf]
  %v339 = vld [vmem:[%s3] sm:$0xf]
  %v340 = vld [vmem:[%s3 + $0x4] sm:$0xf]
  %v341 = vld [vmem:[%s3 + $0x8] sm:$0xf]
  %v342 = vld [vmem:[%s3 + $0xc] sm:$0xf]
  %v343 = vld [vmem:[%s3 + $0x10] sm:$0xf]
  %v344 = vld [vmem:[%s3 + $0x14] sm:$0xf]
  %v345 = vld [vmem:[%s3 + $0x18] sm:$0xf]
  %v346 = vld [vmem:[%s3 + $0x1c] sm:$0xf]
  %v347 = vld [vmem:[%s3 + $0x20] sm:$0xf]
  %v348 = vld [vmem:[%s3 + $0x24] sm:$0xf]
  %v349 = vld [vmem:[%s3 + $0x28] sm:$0xf]
  %v350 = vld [vmem:[%s3 + $0x2c] sm:$0xf]
  %v351 = vld [vmem:[%s3 + $0x30] sm:$0xf]
  %v352 = vld [vmem:[%s3 + $0x34] sm:$0xf]
  %v353 = vld [vmem:[%s3 + $0x38] sm:$0xf]
  %v354 = vld [vmem:[%s3 + $0x3c] sm:$0xf]
  %v371 = vunpack.c.l.b16 %v323
  %v372 = vunpack.c.l.b16 %v324
  %v373 = vunpack.c.l.b16 %v325
  %v374 = vunpack.c.l.b16 %v326
  %v375 = vunpack.c.l.b16 %v327
  %v376 = vunpack.c.l.b16 %v328
  %v377 = vunpack.c.l.b16 %v329
  %v378 = vunpack.c.l.b16 %v330
  %v379 = vunpack.c.l.b16 %v331
  %v380 = vunpack.c.l.b16 %v332
  %v381 = vunpack.c.l.b16 %v333
  %v382 = vunpack.c.l.b16 %v334
  %v383 = vunpack.c.l.b16 %v335
  %v384 = vunpack.c.l.b16 %v336
  %v385 = vunpack.c.l.b16 %v337
  %v386 = vunpack.c.l.b16 %v338
  %v387 = vpack.c.b16 %v372, %v371
  %v388 = vpack.c.b16 %v374, %v373
  %v389 = vpack.c.b16 %v376, %v375
  %v390 = vpack.c.b16 %v378, %v377
  %v391 = vpack.c.b16 %v380, %v379
  %v392 = vpack.c.b16 %v382, %v381
  %v393 = vpack.c.b16 %v384, %v383
  %v394 = vpack.c.b16 %v386, %v385
  %v419 = vunpack.c.l.b16 %v339
  %v420 = vunpack.c.l.b16 %v340
  %v421 = vunpack.c.l.b16 %v341
  %v422 = vunpack.c.l.b16 %v342
  %v423 = vunpack.c.l.b16 %v343
  %v424 = vunpack.c.l.b16 %v344
  %v425 = vunpack.c.l.b16 %v345
  %v426 = vunpack.c.l.b16 %v346
  %v427 = vunpack.c.l.b16 %v347
  %v428 = vunpack.c.l.b16 %v348
  %v429 = vunpack.c.l.b16 %v349
  %v430 = vunpack.c.l.b16 %v350
  %v431 = vunpack.c.l.b16 %v351
  %v432 = vunpack.c.l.b16 %v352
  %v433 = vunpack.c.l.b16 %v353
  %v434 = vunpack.c.l.b16 %v354
  %v435 = vpack.c.b16 %v420, %v419
  %v436 = vpack.c.b16 %v422, %v421
  %v437 = vpack.c.b16 %v424, %v423
  %v438 = vpack.c.b16 %v426, %v425
  %v439 = vpack.c.b16 %v428, %v427
  %v440 = vpack.c.b16 %v430, %v429
  %v441 = vpack.c.b16 %v432, %v431
  %v442 = vpack.c.b16 %v434, %v433
  %451 = vmatprep.subr.bf16.mxu0 0
  %452 = vmatpush1.bf16.msra.mxu0 %v435
  %453 = vmatprep.subr.bf16.mxu0 0
  %454 = vmatpush1.bf16.msra.mxu0 %v436
  %455 = vmatprep.subr.bf16.mxu0 0
  %456 = vmatpush1.bf16.msra.mxu0 %v437
  %457 = vmatprep.subr.bf16.mxu0 0
  %458 = vmatpush1.bf16.msra.mxu0 %v438
  %459 = vmatprep.subr.bf16.mxu0 0
  %460 = vmatpush1.bf16.msra.mxu0 %v439
  %461 = vmatprep.subr.bf16.mxu0 0
  %462 = vmatpush1.bf16.msra.mxu0 %v440
  %463 = vmatprep.subr.bf16.mxu0 0
  %464 = vmatpush1.bf16.msra.mxu0 %v441
  %465 = vmatprep.subr.bf16.mxu0 0
  %466 = vmatpush1.bf16.msra.mxu0 %v442
  %467 = vmatprep.subr.bf16.mxu0 0
  %468 = vmatpush1.bf16.msra.mxu0 0
  %469 = vmatprep.subr.bf16.mxu0 0
  %470 = vmatpush1.bf16.msra.mxu0 0
  %471 = vmatprep.subr.bf16.mxu0 0
  %472 = vmatpush1.bf16.msra.mxu0 0
  %473 = vmatprep.subr.bf16.mxu0 0
  %474 = vmatpush1.bf16.msra.mxu0 0
  %475 = vmatprep.subr.bf16.mxu0 0
  %476 = vmatpush1.bf16.msra.mxu0 0
  %477 = vmatprep.subr.bf16.mxu0 0
  %478 = vmatpush1.bf16.msra.mxu0 0
  %479 = vmatprep.subr.bf16.mxu0 0
  %480 = vmatpush1.bf16.msra.mxu0 0
  %481 = vmatprep.subr.bf16.mxu0 0
  %482 = vmatpush1.bf16.msra.mxu0 0
  %483 = vmatprep.mubr.bf16.mxu0 0
  %484 = vmatmul.mubr.bf16.gmra.mrb[0].mxu0 %v387
  %v485 = vpop.f32.mrb[0].mxu0
  %v486 = vadd.f32 0.0, %v485
  %v487 = vpop.f32.mrb[0].mxu0
  %v488 = vpop.f32.mrb[0].mxu0
  %v489 = vadd.f32 0.0, %v488
  %v490 = vpop.f32.mrb[0].mxu0
  %491 = vmatprep.mubr.bf16.mxu0 0
  %492 = vmatmul.mubr.bf16.gmra.mrb[0].mxu0 %v388
  %v493 = vpop.f32.mrb[0].mxu0
  %v494 = vadd.f32 0.0, %v493
  %v495 = vpop.f32.mrb[0].mxu0
  %v496 = vpop.f32.mrb[0].mxu0
  %v497 = vadd.f32 0.0, %v496
  %v498 = vpop.f32.mrb[0].mxu0
  %499 = vmatprep.mubr.bf16.mxu0 0
  %500 = vmatmul.mubr.bf16.gmra.mrb[0].mxu0 %v389
  %v501 = vpop.f32.mrb[0].mxu0
  %v502 = vadd.f32 0.0, %v501
  %v503 = vpop.f32.mrb[0].mxu0
  %v504 = vpop.f32.mrb[0].mxu0
  %v505 = vadd.f32 0.0, %v504
  %v506 = vpop.f32.mrb[0].mxu0
  %507 = vmatprep.mubr.bf16.mxu0 0
  %508 = vmatmul.mubr.bf16.gmra.mrb[0].mxu0 %v390
  %v509 = vpop.f32.mrb[0].mxu0
  %v510 = vadd.f32 0.0, %v509
  %v511 = vpop.f32.mrb[0].mxu0
  %v512 = vpop.f32.mrb[0].mxu0
  %v513 = vadd.f32 0.0, %v512
  %v514 = vpop.f32.mrb[0].mxu0
  %515 = vmatprep.mubr.bf16.mxu0 0
  %516 = vmatmul.mubr.bf16.gmra.mrb[0].mxu0 %v391
  %v517 = vpop.f32.mrb[0].mxu0
  %v518 = vadd.f32 0.0, %v517
  %v519 = vpop.f32.mrb[0].mxu0
  %v520 = vpop.f32.mrb[0].mxu0
  %v521 = vadd.f32 0.0, %v520
  %v522 = vpop.f32.mrb[0].mxu0
  %523 = vmatprep.mubr.bf16.mxu0 0
  %524 = vmatmul.mubr.bf16.gmra.mrb[0].mxu0 %v392
  %v525 = vpop.f32.mrb[0].mxu0
  %v526 = vadd.f32 0.0, %v525
  %v527 = vpop.f32.mrb[0].mxu0
  %v528 = vpop.f32.mrb[0].mxu0
  %v529 = vadd.f32 0.0, %v528
  %v530 = vpop.f32.mrb[0].mxu0
  %531 = vmatprep.mubr.bf16.mxu0 0
  %532 = vmatmul.mubr.bf16.gmra.mrb[0].mxu0 %v393
  %v533 = vpop.f32.mrb[0].mxu0
  %v534 = vadd.f32 0.0, %v533
  %v535 = vpop.f32.mrb[0].mxu0
  %v536 = vpop.f32.mrb[0].mxu0
  %v537 = vadd.f32 0.0, %v536
  %v538 = vpop.f32.mrb[0].mxu0
  %539 = vmatprep.mubr.bf16.mxu0 0
  %540 = vmatmul.mubr.bf16.gmra.mrb[0].mxu0 %v394
  %v541 = vpop.f32.mrb[0].mxu0
  %v542 = vadd.f32 0.0, %v541
  %v543 = vpop.f32.mrb[0].mxu0
  %v544 = vpop.f32.mrb[0].mxu0
  %v545 = vadd.f32 0.0, %v544
  %v546 = vpop.f32.mrb[0].mxu0
  %547 = vdwg.mxu0
  %v548 = vpack.c.bf16 %v489, %v486
  %v549 = vpack.c.bf16 %v497, %v494
  %v550 = vpack.c.bf16 %v505, %v502
  %v551 = vpack.c.bf16 %v513, %v510
  %v552 = vpack.c.bf16 %v521, %v518
  %v553 = vpack.c.bf16 %v529, %v526
  %v554 = vpack.c.bf16 %v537, %v534
  %v555 = vpack.c.bf16 %v545, %v542
  %v564 = vunpack.c.l.b16 %v548
  %v565 = vunpack.c.h.b16 %v548
  %v566 = vunpack.c.l.b16 %v549
  %v567 = vunpack.c.h.b16 %v549
  %v568 = vunpack.c.l.b16 %v550
  %v569 = vunpack.c.h.b16 %v550
  %v570 = vunpack.c.l.b16 %v551
  %v571 = vunpack.c.h.b16 %v551
  %v572 = vunpack.c.l.b16 %v552
  %v573 = vunpack.c.h.b16 %v552
  %v574 = vunpack.c.l.b16 %v553
  %v575 = vunpack.c.h.b16 %v553
  %v576 = vunpack.c.l.b16 %v554
  %v577 = vunpack.c.h.b16 %v554
  %v578 = vunpack.c.l.b16 %v555
  %v579 = vunpack.c.h.b16 %v555
  %v580 = vpack.c.b16 %v564, %v564
  %v581 = vpack.c.b16 %v565, %v565
  %v582 = vpack.c.b16 %v566, %v566
  %v583 = vpack.c.b16 %v567, %v567
  %v584 = vpack.c.b16 %v568, %v568
  %v585 = vpack.c.b16 %v569, %v569
  %v586 = vpack.c.b16 %v570, %v570
  %v587 = vpack.c.b16 %v571, %v571
  %v588 = vpack.c.b16 %v572, %v572
  %v589 = vpack.c.b16 %v573, %v573
  %v590 = vpack.c.b16 %v574, %v574
  %v591 = vpack.c.b16 %v575, %v575
  %v592 = vpack.c.b16 %v576, %v576
  %v593 = vpack.c.b16 %v577, %v577
  %v594 = vpack.c.b16 %v578, %v578
  %v595 = vpack.c.b16 %v579, %v579
  %612 = vst [vmem:[%s4 + $0x4] sm:$0xf] %v580
  %613 = vst [vmem:[%s4 + $0xc] sm:$0xf] %v581
  %614 = vst [vmem:[%s4 + $0x14] sm:$0xf] %v582
  %615 = vst [vmem:[%s4 + $0x1c] sm:$0xf] %v583
  %616 = vst [vmem:[%s4 + $0x24] sm:$0xf] %v584
  %617 = vst [vmem:[%s4 + $0x2c] sm:$0xf] %v585
  %618 = vst [vmem:[%s4 + $0x34] sm:$0xf] %v586
  %619 = vst [vmem:[%s4 + $0x3c] sm:$0xf] %v587
  %620 = vst [vmem:[%s4 + $0x44] sm:$0xf] %v588
  %621 = vst [vmem:[%s4 + $0x4c] sm:$0xf] %v589
  %622 = vst [vmem:[%s4 + $0x54] sm:$0xf] %v590
  %623 = vst [vmem:[%s4 + $0x5c] sm:$0xf] %v591
  %624 = vst [vmem:[%s4 + $0x64] sm:$0xf] %v592
  %625 = vst [vmem:[%s4 + $0x6c] sm:$0xf] %v593
  %626 = vst [vmem:[%s4 + $0x74] sm:$0xf] %v594
  %627 = vst [vmem:[%s4 + $0x7c] sm:$0xf] %v595
  // Predicated region
  $region18: #{gcn_align_forward.12} parent=0 // pred_check
    _
  $region19: #{gcn_align_forward.12} parent=0 // pred_check_branch
    %629 = sbr.rel (0) target = $region21
  $region20: #{gcn_align_forward.12} parent=0 // pred_region
    _
  $region21: #{gcn_align_forward.12} parent=0 // pred_fallthru
    _
  // Predicated region
  $region22: #{gcn_align_forward.12} parent=0 // pred_check
    _
  $region23: #{gcn_align_forward.12} parent=0 // pred_check_branch
    %631 = sbr.rel (0) target = $region25
  $region24: #{gcn_align_forward.12} parent=0 // pred_region
    _
  $region25: #{gcn_align_forward.12} parent=0 // pred_fallthru
    _

// kernel: gcn_align_forward.15
$region0: #{gcn_align_forward.15}
  #allocation0 [shape = 'u32[]', space=smem, size = 0x4, offset = 0x4, fixed_abs, tag = 'smem constant byte address 0x4 - core index']
  #allocation1 [shape = 'u32[144,128]{1,0:T(1,128)}', space=vmem, size = 0x12000, scoped, tag = 'internal scratch']
  #allocation2 [shape = 'f32[128,256]{1,0:T(8,128)}', space=vmem, size = 0x20000, scoped, tag = 'scratch operand']
  %s0 = inlined_call_operand.vmem [shape: bf16[128,128], index: 0, kind: input, shape index: {}]
  %s1 = inlined_call_operand.vmem [shape: bf16[128,256], index: 1, kind: input, shape index: {}]
  %s2 = inlined_call_operand.vmem [shape: f32[128,128], index: 2, kind: output, shape index: {0}]
  %s3 = inlined_call_operand.vmem [shape: f32[128,128], index: 3, kind: output, shape index: {1}]
  %4 = xla_tuple %s2, %s3
  %s5 = sld [smem:[#allocation0]]
  $region34: #{gcn_align_forward.15} parent=0
    _
  %s7 = ssub.s32 1, %s5
  %s8 = scalar_select 0, %s7, %s5
  // Predicated region
  $region2: #{gcn_align_forward.15} parent=0 // pred_check
    _
  $region3: #{gcn_align_forward.15} parent=0 // pred_check_branch
    %10 = sbr.rel (0) target = $region5
  $region4: #{gcn_align_forward.15} parent=0 // pred_region
    _
  $region5: #{gcn_align_forward.15} parent=0 // pred_fallthru
    _
  // Predicated region
  $region6: #{gcn_align_forward.15} parent=0 // pred_check
    _
  $region7: #{gcn_align_forward.15} parent=0 // pred_check_branch
    %12 = sbr.rel (0) target = $region9
  $region8: #{gcn_align_forward.15} parent=0 // pred_region
    _
  $region9: #{gcn_align_forward.15} parent=0 // pred_fallthru
    _
  %p14 = scmp.eq.s32.totalorder 0, 0
  // Predicated region
  $region10: #{gcn_align_forward.15} parent=0 // pred_check
    %p15 = pneg %p14
  $region11: #{gcn_align_forward.15} parent=0 // pred_check_branch
    %17 = sbr.rel (%p15) target = $region13
  $region12: #{gcn_align_forward.15} parent=0 // pred_region
    %18 = vst [vmem:[#allocation2] sm:$0xff] 0.0
    %19 = vst [vmem:[#allocation2 + $0x8] sm:$0xff] 0.0
    %20 = vst [vmem:[#allocation2 + $0x10] sm:$0xff] 0.0
    %21 = vst [vmem:[#allocation2 + $0x18] sm:$0xff] 0.0
    %22 = vst [vmem:[#allocation2 + $0x20] sm:$0xff] 0.0
    %23 = vst [vmem:[#allocation2 + $0x28] sm:$0xff] 0.0
    %24 = vst [vmem:[#allocation2 + $0x30] sm:$0xff] 0.0
    %25 = vst [vmem:[#allocation2 + $0x38] sm:$0xff] 0.0
    %26 = vst [vmem:[#allocation2 + $0x40] sm:$0xff] 0.0
    %27 = vst [vmem:[#allocation2 + $0x48] sm:$0xff] 0.0
    %28 = vst [vmem:[#allocation2 + $0x50] sm:$0xff] 0.0
    %29 = vst [vmem:[#allocation2 + $0x58] sm:$0xff] 0.0
    %30 = vst [vmem:[#allocation2 + $0x60] sm:$0xff] 0.0
    %31 = vst [vmem:[#allocation2 + $0x68] sm:$0xff] 0.0
    %32 = vst [vmem:[#allocation2 + $0x70] sm:$0xff] 0.0
    %33 = vst [vmem:[#allocation2 + $0x78] sm:$0xff] 0.0
    %34 = vst [vmem:[#allocation2 + $0x80] sm:$0xff] 0.0
    %35 = vst [vmem:[#allocation2 + $0x88] sm:$0xff] 0.0
    %36 = vst [vmem:[#allocation2 + $0x90] sm:$0xff] 0.0
    %37 = vst [vmem:[#allocation2 + $0x98] sm:$0xff] 0.0
    %38 = vst [vmem:[#allocation2 + $0xa0] sm:$0xff] 0.0
    %39 = vst [vmem:[#allocation2 + $0xa8] sm:$0xff] 0.0
    %40 = vst [vmem:[#allocation2 + $0xb0] sm:$0xff] 0.0
    %41 = vst [vmem:[#allocation2 + $0xb8] sm:$0xff] 0.0
    %42 = vst [vmem:[#allocation2 + $0xc0] sm:$0xff] 0.0
    %43 = vst [vmem:[#allocation2 + $0xc8] sm:$0xff] 0.0
    %44 = vst [vmem:[#allocation2 + $0xd0] sm:$0xff] 0.0
    %45 = vst [vmem:[#allocation2 + $0xd8] sm:$0xff] 0.0
    %46 = vst [vmem:[#allocation2 + $0xe0] sm:$0xff] 0.0
    %47 = vst [vmem:[#allocation2 + $0xe8] sm:$0xff] 0.0
    %48 = vst [vmem:[#allocation2 + $0xf0] sm:$0xff] 0.0
    %49 = vst [vmem:[#allocation2 + $0xf8] sm:$0xff] 0.0
  $region13: #{gcn_align_forward.15} parent=0 // pred_fallthru
    _
  %s50 = smul.u32 0, 128
  %s51 = sshra.s32 %s50, 3
  %s52 = sand.u32 %s50, 7
  %s53 = smul.u32 %s51, 2
  %s54 = smul.addr %s53, 4
  %s55 = scalar_lea.vmem %s1, %s54
  %v56 = vld [vmem:[%s55] sm:$0xff]
  %v57 = vld [vmem:[%s55 + $0x8] sm:$0xff]
  %v58 = vld [vmem:[%s55 + $0x10] sm:$0xff]
  %v59 = vld [vmem:[%s55 + $0x18] sm:$0xff]
  %v60 = vld [vmem:[%s55 + $0x20] sm:$0xff]
  %v61 = vld [vmem:[%s55 + $0x28] sm:$0xff]
  %v62 = vld [vmem:[%s55 + $0x30] sm:$0xff]
  %v63 = vld [vmem:[%s55 + $0x38] sm:$0xff]
  %v64 = vld [vmem:[%s55 + $0x40] sm:$0xff]
  %v65 = vld [vmem:[%s55 + $0x48] sm:$0xff]
  %v66 = vld [vmem:[%s55 + $0x50] sm:$0xff]
  %v67 = vld [vmem:[%s55 + $0x58] sm:$0xff]
  %v68 = vld [vmem:[%s55 + $0x60] sm:$0xff]
  %v69 = vld [vmem:[%s55 + $0x68] sm:$0xff]
  %v70 = vld [vmem:[%s55 + $0x70] sm:$0xff]
  %v71 = vld [vmem:[%s55 + $0x78] sm:$0xff]
  %v72 = vld [vmem:[#allocation2] sm:$0xff]
  %v73 = vld [vmem:[#allocation2 + $0x8] sm:$0xff]
  %v74 = vld [vmem:[#allocation2 + $0x10] sm:$0xff]
  %v75 = vld [vmem:[#allocation2 + $0x18] sm:$0xff]
  %v76 = vld [vmem:[#allocation2 + $0x20] sm:$0xff]
  %v77 = vld [vmem:[#allocation2 + $0x28] sm:$0xff]
  %v78 = vld [vmem:[#allocation2 + $0x30] sm:$0xff]
  %v79 = vld [vmem:[#allocation2 + $0x38] sm:$0xff]
  %v80 = vld [vmem:[#allocation2 + $0x40] sm:$0xff]
  %v81 = vld [vmem:[#allocation2 + $0x48] sm:$0xff]
  %v82 = vld [vmem:[#allocation2 + $0x50] sm:$0xff]
  %v83 = vld [vmem:[#allocation2 + $0x58] sm:$0xff]
  %v84 = vld [vmem:[#allocation2 + $0x60] sm:$0xff]
  %v85 = vld [vmem:[#allocation2 + $0x68] sm:$0xff]
  %v86 = vld [vmem:[#allocation2 + $0x70] sm:$0xff]
  %v87 = vld [vmem:[#allocation2 + $0x78] sm:$0xff]
  %v88 = vld [vmem:[#allocation2 + $0x80] sm:$0xff]
  %v89 = vld [vmem:[#allocation2 + $0x88] sm:$0xff]
  %v90 = vld [vmem:[#allocation2 + $0x90] sm:$0xff]
  %v91 = vld [vmem:[#allocation2 + $0x98] sm:$0xff]
  %v92 = vld [vmem:[#allocation2 + $0xa0] sm:$0xff]
  %v93 = vld [vmem:[#allocation2 + $0xa8] sm:$0xff]
  %v94 = vld [vmem:[#allocation2 + $0xb0] sm:$0xff]
  %v95 = vld [vmem:[#allocation2 + $0xb8] sm:$0xff]
  %v96 = vld [vmem:[#allocation2 + $0xc0] sm:$0xff]
  %v97 = vld [vmem:[#allocation2 + $0xc8] sm:$0xff]
  %v98 = vld [vmem:[#allocation2 + $0xd0] sm:$0xff]
  %v99 = vld [vmem:[#allocation2 + $0xd8] sm:$0xff]
  %v100 = vld [vmem:[#allocation2 + $0xe0] sm:$0xff]
  %v101 = vld [vmem:[#allocation2 + $0xe8] sm:$0xff]
  %v102 = vld [vmem:[#allocation2 + $0xf0] sm:$0xff]
  %v103 = vld [vmem:[#allocation2 + $0xf8] sm:$0xff]
  %v104 = vld [vmem:[%s0] sm:$0xf]
  %v105 = vld [vmem:[%s0 + $0x4] sm:$0xf]
  %v106 = vld [vmem:[%s0 + $0x8] sm:$0xf]
  %v107 = vld [vmem:[%s0 + $0xc] sm:$0xf]
  %v108 = vld [vmem:[%s0 + $0x10] sm:$0xf]
  %v109 = vld [vmem:[%s0 + $0x14] sm:$0xf]
  %v110 = vld [vmem:[%s0 + $0x18] sm:$0xf]
  %v111 = vld [vmem:[%s0 + $0x1c] sm:$0xf]
  %v112 = vld [vmem:[%s0 + $0x20] sm:$0xf]
  %v113 = vld [vmem:[%s0 + $0x24] sm:$0xf]
  %v114 = vld [vmem:[%s0 + $0x28] sm:$0xf]
  %v115 = vld [vmem:[%s0 + $0x2c] sm:$0xf]
  %v116 = vld [vmem:[%s0 + $0x30] sm:$0xf]
  %v117 = vld [vmem:[%s0 + $0x34] sm:$0xf]
  %v118 = vld [vmem:[%s0 + $0x38] sm:$0xf]
  %v119 = vld [vmem:[%s0 + $0x3c] sm:$0xf]
  %v136 = vunpack.c.l.b16 %v104
  %v137 = vunpack.c.l.b16 %v105
  %v138 = vunpack.c.l.b16 %v106
  %v139 = vunpack.c.l.b16 %v107
  %v140 = vunpack.c.l.b16 %v108
  %v141 = vunpack.c.l.b16 %v109
  %v142 = vunpack.c.l.b16 %v110
  %v143 = vunpack.c.l.b16 %v111
  %v144 = vunpack.c.l.b16 %v112
  %v145 = vunpack.c.l.b16 %v113
  %v146 = vunpack.c.l.b16 %v114
  %v147 = vunpack.c.l.b16 %v115
  %v148 = vunpack.c.l.b16 %v116
  %v149 = vunpack.c.l.b16 %v117
  %v150 = vunpack.c.l.b16 %v118
  %v151 = vunpack.c.l.b16 %v119
  %v152 = vpack.c.b16 %v137, %v136
  %v153 = vpack.c.b16 %v139, %v138
  %v154 = vpack.c.b16 %v141, %v140
  %v155 = vpack.c.b16 %v143, %v142
  %v156 = vpack.c.b16 %v145, %v144
  %v157 = vpack.c.b16 %v147, %v146
  %v158 = vpack.c.b16 %v149, %v148
  %v159 = vpack.c.b16 %v151, %v150
  %v184 = vunpack.c.l.b16 %v56
  %v185 = vunpack.c.h.b16 %v56
  %v186 = vunpack.c.l.b16 %v57
  %v187 = vunpack.c.h.b16 %v57
  %v188 = vunpack.c.l.b16 %v58
  %v189 = vunpack.c.h.b16 %v58
  %v190 = vunpack.c.l.b16 %v59
  %v191 = vunpack.c.h.b16 %v59
  %v192 = vunpack.c.l.b16 %v60
  %v193 = vunpack.c.h.b16 %v60
  %v194 = vunpack.c.l.b16 %v61
  %v195 = vunpack.c.h.b16 %v61
  %v196 = vunpack.c.l.b16 %v62
  %v197 = vunpack.c.h.b16 %v62
  %v198 = vunpack.c.l.b16 %v63
  %v199 = vunpack.c.h.b16 %v63
  %v200 = vunpack.c.l.b16 %v64
  %v201 = vunpack.c.h.b16 %v64
  %v202 = vunpack.c.l.b16 %v65
  %v203 = vunpack.c.h.b16 %v65
  %v204 = vunpack.c.l.b16 %v66
  %v205 = vunpack.c.h.b16 %v66
  %v206 = vunpack.c.l.b16 %v67
  %v207 = vunpack.c.h.b16 %v67
  %v208 = vunpack.c.l.b16 %v68
  %v209 = vunpack.c.h.b16 %v68
  %v210 = vunpack.c.l.b16 %v69
  %v211 = vunpack.c.h.b16 %v69
  %v212 = vunpack.c.l.b16 %v70
  %v213 = vunpack.c.h.b16 %v70
  %v214 = vunpack.c.l.b16 %v71
  %v215 = vunpack.c.h.b16 %v71
  %v216 = vpack.c.b16 %v186, %v184
  %v217 = vpack.c.b16 %v187, %v185
  %v218 = vpack.c.b16 %v190, %v188
  %v219 = vpack.c.b16 %v191, %v189
  %v220 = vpack.c.b16 %v194, %v192
  %v221 = vpack.c.b16 %v195, %v193
  %v222 = vpack.c.b16 %v198, %v196
  %v223 = vpack.c.b16 %v199, %v197
  %v224 = vpack.c.b16 %v202, %v200
  %v225 = vpack.c.b16 %v203, %v201
  %v226 = vpack.c.b16 %v206, %v204
  %v227 = vpack.c.b16 %v207, %v205
  %v228 = vpack.c.b16 %v210, %v208
  %v229 = vpack.c.b16 %v211, %v209
  %v230 = vpack.c.b16 %v214, %v212
  %v231 = vpack.c.b16 %v215, %v213
  %248 = vmatprep.subr.bf16.mxu0 %v217
  %249 = vmatpush1.bf16.msra.mxu0 %v216
  %250 = vmatprep.subr.bf16.mxu0 %v219
  %251 = vmatpush1.bf16.msra.mxu0 %v218
  %252 = vmatprep.subr.bf16.mxu0 %v221
  %253 = vmatpush1.bf16.msra.mxu0 %v220
  %254 = vmatprep.subr.bf16.mxu0 %v223
  %255 = vmatpush1.bf16.msra.mxu0 %v222
  %256 = vmatprep.subr.bf16.mxu0 %v225
  %257 = vmatpush1.bf16.msra.mxu0 %v224
  %258 = vmatprep.subr.bf16.mxu0 %v227
  %259 = vmatpush1.bf16.msra.mxu0 %v226
  %260 = vmatprep.subr.bf16.mxu0 %v229
  %261 = vmatpush1.bf16.msra.mxu0 %v228
  %262 = vmatprep.subr.bf16.mxu0 %v231
  %263 = vmatpush1.bf16.msra.mxu0 %v230
  %264 = vmatprep.subr.bf16.mxu0 0
  %265 = vmatpush1.bf16.msra.mxu0 0
  %266 = vmatprep.subr.bf16.mxu0 0
  %267 = vmatpush1.bf16.msra.mxu0 0
  %268 = vmatprep.subr.bf16.mxu0 0
  %269 = vmatpush1.bf16.msra.mxu0 0
  %270 = vmatprep.subr.bf16.mxu0 0
  %271 = vmatpush1.bf16.msra.mxu0 0
  %272 = vmatprep.subr.bf16.mxu0 0
  %273 = vmatpush1.bf16.msra.mxu0 0
  %274 = vmatprep.subr.bf16.mxu0 0
  %275 = vmatpush1.bf16.msra.mxu0 0
  %276 = vmatprep.subr.bf16.mxu0 0
  %277 = vmatpush1.bf16.msra.mxu0 0
  %278 = vmatprep.subr.bf16.mxu0 0
  %279 = vmatpush1.bf16.msra.mxu0 0
  %280 = vmatprep.mubr.bf16.mxu0 0
  %281 = vmatmul.mubr.bf16.gmra.mrb[0].mxu0 %v152
  %v282 = vpop.f32.mrb[0].mxu0
  %v283 = vadd.f32 0.0, %v282
  %v284 = vpop.f32.mrb[0].mxu0
  %v285 = vadd.f32 0.0, %v284
  %v286 = vpop.f32.mrb[0].mxu0
  %v287 = vadd.f32 0.0, %v286
  %v288 = vpop.f32.mrb[0].mxu0
  %v289 = vadd.f32 0.0, %v288
  %290 = vmatprep.mubr.bf16.mxu0 0
  %291 = vmatmul.mubr.bf16.gmra.mrb[0].mxu0 %v153
  %v292 = vpop.f32.mrb[0].mxu0
  %v293 = vadd.f32 0.0, %v292
  %v294 = vpop.f32.mrb[0].mxu0
  %v295 = vadd.f32 0.0, %v294
  %v296 = vpop.f32.mrb[0].mxu0
  %v297 = vadd.f32 0.0, %v296
  %v298 = vpop.f32.mrb[0].mxu0
  %v299 = vadd.f32 0.0, %v298
  %300 = vmatprep.mubr.bf16.mxu0 0
  %301 = vmatmul.mubr.bf16.gmra.mrb[0].mxu0 %v154
  %v302 = vpop.f32.mrb[0].mxu0
  %v303 = vadd.f32 0.0, %v302
  %v304 = vpop.f32.mrb[0].mxu0
  %v305 = vadd.f32 0.0, %v304
  %v306 = vpop.f32.mrb[0].mxu0
  %v307 = vadd.f32 0.0, %v306
  %v308 = vpop.f32.mrb[0].mxu0
  %v309 = vadd.f32 0.0, %v308
  %310 = vmatprep.mubr.bf16.mxu0 0
  %311 = vmatmul.mubr.bf16.gmra.mrb[0].mxu0 %v155
  %v312 = vpop.f32.mrb[0].mxu0
  %v313 = vadd.f32 0.0, %v312
  %v314 = vpop.f32.mrb[0].mxu0
  %v315 = vadd.f32 0.0, %v314
  %v316 = vpop.f32.mrb[0].mxu0
  %v317 = vadd.f32 0.0, %v316
  %v318 = vpop.f32.mrb[0].mxu0
  %v319 = vadd.f32 0.0, %v318
  %320 = vmatprep.mubr.bf16.mxu0 0
  %321 = vmatmul.mubr.bf16.gmra.mrb[0].mxu0 %v156
  %v322 = vpop.f32.mrb[0].mxu0
  %v323 = vadd.f32 0.0, %v322
  %v324 = vpop.f32.mrb[0].mxu0
  %v325 = vadd.f32 0.0, %v324
  %v326 = vpop.f32.mrb[0].mxu0
  %v327 = vadd.f32 0.0, %v326
  %v328 = vpop.f32.mrb[0].mxu0
  %v329 = vadd.f32 0.0, %v328
  %330 = vmatprep.mubr.bf16.mxu0 0
  %331 = vmatmul.mubr.bf16.gmra.mrb[0].mxu0 %v157
  %v332 = vpop.f32.mrb[0].mxu0
  %v333 = vadd.f32 0.0, %v332
  %v334 = vpop.f32.mrb[0].mxu0
  %v335 = vadd.f32 0.0, %v334
  %v336 = vpop.f32.mrb[0].mxu0
  %v337 = vadd.f32 0.0, %v336
  %v338 = vpop.f32.mrb[0].mxu0
  %v339 = vadd.f32 0.0, %v338
  %340 = vmatprep.mubr.bf16.mxu0 0
  %341 = vmatmul.mubr.bf16.gmra.mrb[0].mxu0 %v158
  %v342 = vpop.f32.mrb[0].mxu0
  %v343 = vadd.f32 0.0, %v342
  %v344 = vpop.f32.mrb[0].mxu0
  %v345 = vadd.f32 0.0, %v344
  %v346 = vpop.f32.mrb[0].mxu0
  %v347 = vadd.f32 0.0, %v346
  %v348 = vpop.f32.mrb[0].mxu0
  %v349 = vadd.f32 0.0, %v348
  %350 = vmatprep.mubr.bf16.mxu0 0
  %351 = vmatmul.mubr.bf16.gmra.mrb[0].mxu0 %v159
  %v352 = vpop.f32.mrb[0].mxu0
  %v353 = vadd.f32 0.0, %v352
  %v354 = vpop.f32.mrb[0].mxu0
  %v355 = vadd.f32 0.0, %v354
  %v356 = vpop.f32.mrb[0].mxu0
  %v357 = vadd.f32 0.0, %v356
  %v358 = vpop.f32.mrb[0].mxu0
  %v359 = vadd.f32 0.0, %v358
  %360 = vdwg.mxu0
  %v361 = vadd.f32 %v72, %v283
  %v362 = vadd.f32 %v73, %v285
  %v363 = vadd.f32 %v74, %v287
  %v364 = vadd.f32 %v75, %v289
  %v365 = vadd.f32 %v76, %v293
  %v366 = vadd.f32 %v77, %v295
  %v367 = vadd.f32 %v78, %v297
  %v368 = vadd.f32 %v79, %v299
  %v369 = vadd.f32 %v80, %v303
  %v370 = vadd.f32 %v81, %v305
  %v371 = vadd.f32 %v82, %v307
  %v372 = vadd.f32 %v83, %v309
  %v373 = vadd.f32 %v84, %v313
  %v374 = vadd.f32 %v85, %v315
  %v375 = vadd.f32 %v86, %v317
  %v376 = vadd.f32 %v87, %v319
  %v377 = vadd.f32 %v88, %v323
  %v378 = vadd.f32 %v89, %v325
  %v379 = vadd.f32 %v90, %v327
  %v380 = vadd.f32 %v91, %v329
  %v381 = vadd.f32 %v92, %v333
  %v382 = vadd.f32 %v93, %v335
  %v383 = vadd.f32 %v94, %v337
  %v384 = vadd.f32 %v95, %v339
  %v385 = vadd.f32 %v96, %v343
  %v386 = vadd.f32 %v97, %v345
  %v387 = vadd.f32 %v98, %v347
  %v388 = vadd.f32 %v99, %v349
  %v389 = vadd.f32 %v100, %v353
  %v390 = vadd.f32 %v101, %v355
  %v391 = vadd.f32 %v102, %v357
  %v392 = vadd.f32 %v103, %v359
  %393 = vst [vmem:[#allocation2] sm:$0xff] %v361
  %394 = vst [vmem:[#allocation2 + $0x8] sm:$0xff] %v362
  %395 = vst [vmem:[#allocation2 + $0x10] sm:$0xff] %v363
  %396 = vst [vmem:[#allocation2 + $0x18] sm:$0xff] %v364
  %397 = vst [vmem:[#allocation2 + $0x20] sm:$0xff] %v365
  %398 = vst [vmem:[#allocation2 + $0x28] sm:$0xff] %v366
  %399 = vst [vmem:[#allocation2 + $0x30] sm:$0xff] %v367
  %400 = vst [vmem:[#allocation2 + $0x38] sm:$0xff] %v368
  %401 = vst [vmem:[#allocation2 + $0x40] sm:$0xff] %v369
  %402 = vst [vmem:[#allocation2 + $0x48] sm:$0xff] %v370
  %403 = vst [vmem:[#allocation2 + $0x50] sm:$0xff] %v371
  %404 = vst [vmem:[#allocation2 + $0x58] sm:$0xff] %v372
  %405 = vst [vmem:[#allocation2 + $0x60] sm:$0xff] %v373
  %406 = vst [vmem:[#allocation2 + $0x68] sm:$0xff] %v374
  %407 = vst [vmem:[#allocation2 + $0x70] sm:$0xff] %v375
  %408 = vst [vmem:[#allocation2 + $0x78] sm:$0xff] %v376
  %409 = vst [vmem:[#allocation2 + $0x80] sm:$0xff] %v377
  %410 = vst [vmem:[#allocation2 + $0x88] sm:$0xff] %v378
  %411 = vst [vmem:[#allocation2 + $0x90] sm:$0xff] %v379
  %412 = vst [vmem:[#allocation2 + $0x98] sm:$0xff] %v380
  %413 = vst [vmem:[#allocation2 + $0xa0] sm:$0xff] %v381
  %414 = vst [vmem:[#allocation2 + $0xa8] sm:$0xff] %v382
  %415 = vst [vmem:[#allocation2 + $0xb0] sm:$0xff] %v383
  %416 = vst [vmem:[#allocation2 + $0xb8] sm:$0xff] %v384
  %417 = vst [vmem:[#allocation2 + $0xc0] sm:$0xff] %v385
  %418 = vst [vmem:[#allocation2 + $0xc8] sm:$0xff] %v386
  %419 = vst [vmem:[#allocation2 + $0xd0] sm:$0xff] %v387
  %420 = vst [vmem:[#allocation2 + $0xd8] sm:$0xff] %v388
  %421 = vst [vmem:[#allocation2 + $0xe0] sm:$0xff] %v389
  %422 = vst [vmem:[#allocation2 + $0xe8] sm:$0xff] %v390
  %423 = vst [vmem:[#allocation2 + $0xf0] sm:$0xff] %v391
  %424 = vst [vmem:[#allocation2 + $0xf8] sm:$0xff] %v392
  // Predicated region
  $region14: #{gcn_align_forward.15} parent=0 // pred_check
    %p425 = pneg %p14
  $region15: #{gcn_align_forward.15} parent=0 // pred_check_branch
    %427 = sbr.rel (%p425) target = $region17
  $region16: #{gcn_align_forward.15} parent=0 // pred_region
    %v428 = vld [vmem:[#allocation2] sm:$0xff]
    %v429 = vld [vmem:[#allocation2 + $0x8] sm:$0xff]
    %v430 = vld [vmem:[#allocation2 + $0x10] sm:$0xff]
    %v431 = vld [vmem:[#allocation2 + $0x18] sm:$0xff]
    %v432 = vld [vmem:[#allocation2 + $0x20] sm:$0xff]
    %v433 = vld [vmem:[#allocation2 + $0x28] sm:$0xff]
    %v434 = vld [vmem:[#allocation2 + $0x30] sm:$0xff]
    %v435 = vld [vmem:[#allocation2 + $0x38] sm:$0xff]
    %v436 = vld [vmem:[#allocation2 + $0x40] sm:$0xff]
    %v437 = vld [vmem:[#allocation2 + $0x48] sm:$0xff]
    %v438 = vld [vmem:[#allocation2 + $0x50] sm:$0xff]
    %v439 = vld [vmem:[#allocation2 + $0x58] sm:$0xff]
    %v440 = vld [vmem:[#allocation2 + $0x60] sm:$0xff]
    %v441 = vld [vmem:[#allocation2 + $0x68] sm:$0xff]
    %v442 = vld [vmem:[#allocation2 + $0x70] sm:$0xff]
    %v443 = vld [vmem:[#allocation2 + $0x78] sm:$0xff]
    %v444 = vld [vmem:[#allocation2 + $0x80] sm:$0xff]
    %v445 = vld [vmem:[#allocation2 + $0x88] sm:$0xff]
    %v446 = vld [vmem:[#allocation2 + $0x90] sm:$0xff]
    %v447 = vld [vmem:[#allocation2 + $0x98] sm:$0xff]
    %v448 = vld [vmem:[#allocation2 + $0xa0] sm:$0xff]
    %v449 = vld [vmem:[#allocation2 + $0xa8] sm:$0xff]
    %v450 = vld [vmem:[#allocation2 + $0xb0] sm:$0xff]
    %v451 = vld [vmem:[#allocation2 + $0xb8] sm:$0xff]
    %v452 = vld [vmem:[#allocation2 + $0xc0] sm:$0xff]
    %v453 = vld [vmem:[#allocation2 + $0xc8] sm:$0xff]
    %v454 = vld [vmem:[#allocation2 + $0xd0] sm:$0xff]
    %v455 = vld [vmem:[#allocation2 + $0xd8] sm:$0xff]
    %v456 = vld [vmem:[#allocation2 + $0xe0] sm:$0xff]
    %v457 = vld [vmem:[#allocation2 + $0xe8] sm:$0xff]
    %v458 = vld [vmem:[#allocation2 + $0xf0] sm:$0xff]
    %v459 = vld [vmem:[#allocation2 + $0xf8] sm:$0xff]
    %v460 = vmax.f32 %v428, 0.0
    %v461 = vmax.f32 %v429, 0.0
    %v462 = vmax.f32 %v430, 0.0
    %v463 = vmax.f32 %v431, 0.0
    %v464 = vmax.f32 %v432, 0.0
    %v465 = vmax.f32 %v433, 0.0
    %v466 = vmax.f32 %v434, 0.0
    %v467 = vmax.f32 %v435, 0.0
    %v468 = vmax.f32 %v436, 0.0
    %v469 = vmax.f32 %v437, 0.0
    %v470 = vmax.f32 %v438, 0.0
    %v471 = vmax.f32 %v439, 0.0
    %v472 = vmax.f32 %v440, 0.0
    %v473 = vmax.f32 %v441, 0.0
    %v474 = vmax.f32 %v442, 0.0
    %v475 = vmax.f32 %v443, 0.0
    %v476 = vmax.f32 %v444, 0.0
    %v477 = vmax.f32 %v445, 0.0
    %v478 = vmax.f32 %v446, 0.0
    %v479 = vmax.f32 %v447, 0.0
    %v480 = vmax.f32 %v448, 0.0
    %v481 = vmax.f32 %v449, 0.0
    %v482 = vmax.f32 %v450, 0.0
    %v483 = vmax.f32 %v451, 0.0
    %v484 = vmax.f32 %v452, 0.0
    %v485 = vmax.f32 %v453, 0.0
    %v486 = vmax.f32 %v454, 0.0
    %v487 = vmax.f32 %v455, 0.0
    %v488 = vmax.f32 %v456, 0.0
    %v489 = vmax.f32 %v457, 0.0
    %v490 = vmax.f32 %v458, 0.0
    %v491 = vmax.f32 %v459, 0.0
    %v492 = vmul.f32 %v460, %v460
    %v493 = vmul.f32 %v462, %v462
    %v494 = vmul.f32 %v464, %v464
    %v495 = vmul.f32 %v466, %v466
    %v496 = vmul.f32 %v468, %v468
    %v497 = vmul.f32 %v470, %v470
    %v498 = vmul.f32 %v472, %v472
    %v499 = vmul.f32 %v474, %v474
    %v500 = vmul.f32 %v476, %v476
    %v501 = vmul.f32 %v478, %v478
    %v502 = vmul.f32 %v480, %v480
    %v503 = vmul.f32 %v482, %v482
    %v504 = vmul.f32 %v484, %v484
    %v505 = vmul.f32 %v486, %v486
    %v506 = vmul.f32 %v488, %v488
    %v507 = vmul.f32 %v490, %v490
    %508 = vadd.xlane.f32.xlu0 %v492
    %v509 = vpop.xlane.xlu0 %508
    %510 = vadd.xlane.f32.xlu0 %v493
    %v511 = vpop.xlane.xlu0 %510
    %512 = vadd.xlane.f32.xlu0 %v494
    %v513 = vpop.xlane.xlu0 %512
    %514 = vadd.xlane.f32.xlu0 %v495
    %v515 = vpop.xlane.xlu0 %514
    %516 = vadd.xlane.f32.xlu0 %v496
    %v517 = vpop.xlane.xlu0 %516
    %518 = vadd.xlane.f32.xlu0 %v497
    %v519 = vpop.xlane.xlu0 %518
    %520 = vadd.xlane.f32.xlu0 %v498
    %v521 = vpop.xlane.xlu0 %520
    %522 = vadd.xlane.f32.xlu0 %v499
    %v523 = vpop.xlane.xlu0 %522
    %524 = vadd.xlane.f32.xlu0 %v500
    %v525 = vpop.xlane.xlu0 %524
    %526 = vadd.xlane.f32.xlu0 %v501
    %v527 = vpop.xlane.xlu0 %526
    %528 = vadd.xlane.f32.xlu0 %v502
    %v529 = vpop.xlane.xlu0 %528
    %530 = vadd.xlane.f32.xlu0 %v503
    %v531 = vpop.xlane.xlu0 %530
    %532 = vadd.xlane.f32.xlu0 %v504
    %v533 = vpop.xlane.xlu0 %532
    %534 = vadd.xlane.f32.xlu0 %v505
    %v535 = vpop.xlane.xlu0 %534
    %536 = vadd.xlane.f32.xlu0 %v506
    %v537 = vpop.xlane.xlu0 %536
    %538 = vadd.xlane.f32.xlu0 %v507
    %v539 = vpop.xlane.xlu0 %538
    %v540 = vmax.f32 %v509, 1e-24
    %v541 = vmax.f32 %v511, 1e-24
    %v542 = vmax.f32 %v513, 1e-24
    %v543 = vmax.f32 %v515, 1e-24
    %v544 = vmax.f32 %v517, 1e-24
    %v545 = vmax.f32 %v519, 1e-24
    %v546 = vmax.f32 %v521, 1e-24
    %v547 = vmax.f32 %v523, 1e-24
    %v548 = vmax.f32 %v525, 1e-24
    %v549 = vmax.f32 %v527, 1e-24
    %v550 = vmax.f32 %v529, 1e-24
    %v551 = vmax.f32 %v531, 1e-24
    %v552 = vmax.f32 %v533, 1e-24
    %v553 = vmax.f32 %v535, 1e-24
    %v554 = vmax.f32 %v537, 1e-24
    %v555 = vmax.f32 %v539, 1e-24
    %v556 = vrsqrt.pop %v540
    %v557 = vrsqrt.pop %v541
    %v558 = vrsqrt.pop %v542
    %v559 = vrsqrt.pop %v543
    %v560 = vrsqrt.pop %v544
    %v561 = vrsqrt.pop %v545
    %v562 = vrsqrt.pop %v546
    %v563 = vrsqrt.pop %v547
    %v564 = vrsqrt.pop %v548
    %v565 = vrsqrt.pop %v549
    %v566 = vrsqrt.pop %v550
    %v567 = vrsqrt.pop %v551
    %v568 = vrsqrt.pop %v552
    %v569 = vrsqrt.pop %v553
    %v570 = vrsqrt.pop %v554
    %v571 = vrsqrt.pop %v555
    %v572 = vmul.f32 %v460, %v556
    %v573 = vmul.f32 %v462, %v557
    %v574 = vmul.f32 %v464, %v558
    %v575 = vmul.f32 %v466, %v559
    %v576 = vmul.f32 %v468, %v560
    %v577 = vmul.f32 %v470, %v561
    %v578 = vmul.f32 %v472, %v562
    %v579 = vmul.f32 %v474, %v563
    %v580 = vmul.f32 %v476, %v564
    %v581 = vmul.f32 %v478, %v565
    %v582 = vmul.f32 %v480, %v566
    %v583 = vmul.f32 %v482, %v567
    %v584 = vmul.f32 %v484, %v568
    %v585 = vmul.f32 %v486, %v569
    %v586 = vmul.f32 %v488, %v570
    %v587 = vmul.f32 %v490, %v571
    %588 = vst [vmem:[%s2] sm:$0xff] %v572
    %589 = vst [vmem:[%s2 + $0x8] sm:$0xff] %v573
    %590 = vst [vmem:[%s2 + $0x10] sm:$0xff] %v574
    %591 = vst [vmem:[%s2 + $0x18] sm:$0xff] %v575
    %592 = vst [vmem:[%s2 + $0x20] sm:$0xff] %v576
    %593 = vst [vmem:[%s2 + $0x28] sm:$0xff] %v577
    %594 = vst [vmem:[%s2 + $0x30] sm:$0xff] %v578
    %595 = vst [vmem:[%s2 + $0x38] sm:$0xff] %v579
    %596 = vst [vmem:[%s2 + $0x40] sm:$0xff] %v580
    %597 = vst [vmem:[%s2 + $0x48] sm:$0xff] %v581
    %598 = vst [vmem:[%s2 + $0x50] sm:$0xff] %v582
    %599 = vst [vmem:[%s2 + $0x58] sm:$0xff] %v583
    %600 = vst [vmem:[%s2 + $0x60] sm:$0xff] %v584
    %601 = vst [vmem:[%s2 + $0x68] sm:$0xff] %v585
    %602 = vst [vmem:[%s2 + $0x70] sm:$0xff] %v586
    %603 = vst [vmem:[%s2 + $0x78] sm:$0xff] %v587
    %604 = vst [vmem:[%s3] sm:$0xff] %v461
    %605 = vst [vmem:[%s3 + $0x8] sm:$0xff] %v463
    %606 = vst [vmem:[%s3 + $0x10] sm:$0xff] %v465
    %607 = vst [vmem:[%s3 + $0x18] sm:$0xff] %v467
    %608 = vst [vmem:[%s3 + $0x20] sm:$0xff] %v469
    %609 = vst [vmem:[%s3 + $0x28] sm:$0xff] %v471
    %610 = vst [vmem:[%s3 + $0x30] sm:$0xff] %v473
    %611 = vst [vmem:[%s3 + $0x38] sm:$0xff] %v475
    %612 = vst [vmem:[%s3 + $0x40] sm:$0xff] %v477
    %613 = vst [vmem:[%s3 + $0x48] sm:$0xff] %v479
    %614 = vst [vmem:[%s3 + $0x50] sm:$0xff] %v481
    %615 = vst [vmem:[%s3 + $0x58] sm:$0xff] %v483
    %616 = vst [vmem:[%s3 + $0x60] sm:$0xff] %v485
    %617 = vst [vmem:[%s3 + $0x68] sm:$0xff] %v487
    %618 = vst [vmem:[%s3 + $0x70] sm:$0xff] %v489
    %619 = vst [vmem:[%s3 + $0x78] sm:$0xff] %v491
  $region17: #{gcn_align_forward.15} parent=0 // pred_fallthru
    _
  // Predicated region
  $region18: #{gcn_align_forward.15} parent=0 // pred_check
    _
  $region19: #{gcn_align_forward.15} parent=0 // pred_check_branch
    %621 = sbr.rel (0) target = $region21
  $region20: #{gcn_align_forward.15} parent=0 // pred_region
    _
  $region21: #{gcn_align_forward.15} parent=0 // pred_fallthru
    _
  // Predicated region
  $region22: #{gcn_align_forward.15} parent=0 // pred_check
    _
  $region23: #{gcn_align_forward.15} parent=0 // pred_check_branch
    %623 = sbr.rel (0) target = $region25
  $region24: #{gcn_align_forward.15} parent=0 // pred_region
    _
  $region25: #{gcn_align_forward.15} parent=0 // pred_fallthru
    _
  // Predicated region
  $region26: #{gcn_align_forward.15} parent=0 // pred_check
    _
  $region27: #{gcn_align_forward.15} parent=0 // pred_check_branch
    %625 = sbr.rel (0) target = $region29
  $region28: #{gcn_align_forward.15} parent=0 // pred_region
    _
  $region29: #{gcn_align_forward.15} parent=0 // pred_fallthru
    _
  // Predicated region
  $region30: #{gcn_align_forward.15} parent=0 // pred_check
    _
  $region31: #{gcn_align_forward.15} parent=0 // pred_check_branch
    %627 = sbr.rel (0) target = $region33
  $region32: #{gcn_align_forward.15} parent=0 // pred_region
    _
  $region33: #{gcn_align_forward.15} parent=0 // pred_fallthru
    _

// kernel: gcn_align_forward.13
$region0: #{gcn_align_forward.13}
  #allocation0 [shape = 'u32[]', space=smem, size = 0x4, offset = 0x4, fixed_abs, tag = 'smem constant byte address 0x4 - core index']
  #allocation1 [shape = 'u32[144,128]{1,0:T(1,128)}', space=vmem, size = 0x12000, scoped, tag = 'internal scratch']
  #allocation2 [shape = 'f32[128,256]{1,0:T(8,128)}', space=vmem, size = 0x20000, scoped, tag = 'scratch operand']
  %s0 = inlined_call_operand.vmem [shape: bf16[128,128], index: 0, kind: input, shape index: {}]
  %s1 = inlined_call_operand.vmem [shape: bf16[128,256], index: 1, kind: input, shape index: {}]
  %s2 = inlined_call_operand.vmem [shape: bf16[128,128], index: 2, kind: output, shape index: {0}]
  %s3 = inlined_call_operand.vmem [shape: bf16[128,128], index: 3, kind: output, shape index: {1}]
  %4 = xla_tuple %s2, %s3
  %s5 = sld [smem:[#allocation0]]
  $region34: #{gcn_align_forward.13} parent=0
    _
  %s7 = ssub.s32 1, %s5
  %s8 = scalar_select 0, %s7, %s5
  // Predicated region
  $region2: #{gcn_align_forward.13} parent=0 // pred_check
    _
  $region3: #{gcn_align_forward.13} parent=0 // pred_check_branch
    %10 = sbr.rel (0) target = $region5
  $region4: #{gcn_align_forward.13} parent=0 // pred_region
    _
  $region5: #{gcn_align_forward.13} parent=0 // pred_fallthru
    _
  // Predicated region
  $region6: #{gcn_align_forward.13} parent=0 // pred_check
    _
  $region7: #{gcn_align_forward.13} parent=0 // pred_check_branch
    %12 = sbr.rel (0) target = $region9
  $region8: #{gcn_align_forward.13} parent=0 // pred_region
    _
  $region9: #{gcn_align_forward.13} parent=0 // pred_fallthru
    _
  %p14 = scmp.eq.s32.totalorder 0, 0
  // Predicated region
  $region10: #{gcn_align_forward.13} parent=0 // pred_check
    %p15 = pneg %p14
  $region11: #{gcn_align_forward.13} parent=0 // pred_check_branch
    %17 = sbr.rel (%p15) target = $region13
  $region12: #{gcn_align_forward.13} parent=0 // pred_region
    %18 = vst [vmem:[#allocation2] sm:$0xff] 0.0
    %19 = vst [vmem:[#allocation2 + $0x8] sm:$0xff] 0.0
    %20 = vst [vmem:[#allocation2 + $0x10] sm:$0xff] 0.0
    %21 = vst [vmem:[#allocation2 + $0x18] sm:$0xff] 0.0
    %22 = vst [vmem:[#allocation2 + $0x20] sm:$0xff] 0.0
    %23 = vst [vmem:[#allocation2 + $0x28] sm:$0xff] 0.0
    %24 = vst [vmem:[#allocation2 + $0x30] sm:$0xff] 0.0
    %25 = vst [vmem:[#allocation2 + $0x38] sm:$0xff] 0.0
    %26 = vst [vmem:[#allocation2 + $0x40] sm:$0xff] 0.0
    %27 = vst [vmem:[#allocation2 + $0x48] sm:$0xff] 0.0
    %28 = vst [vmem:[#allocation2 + $0x50] sm:$0xff] 0.0
    %29 = vst [vmem:[#allocation2 + $0x58] sm:$0xff] 0.0
    %30 = vst [vmem:[#allocation2 + $0x60] sm:$0xff] 0.0
    %31 = vst [vmem:[#allocation2 + $0x68] sm:$0xff] 0.0
    %32 = vst [vmem:[#allocation2 + $0x70] sm:$0xff] 0.0
    %33 = vst [vmem:[#allocation2 + $0x78] sm:$0xff] 0.0
    %34 = vst [vmem:[#allocation2 + $0x80] sm:$0xff] 0.0
    %35 = vst [vmem:[#allocation2 + $0x88] sm:$0xff] 0.0
    %36 = vst [vmem:[#allocation2 + $0x90] sm:$0xff] 0.0
    %37 = vst [vmem:[#allocation2 + $0x98] sm:$0xff] 0.0
    %38 = vst [vmem:[#allocation2 + $0xa0] sm:$0xff] 0.0
    %39 = vst [vmem:[#allocation2 + $0xa8] sm:$0xff] 0.0
    %40 = vst [vmem:[#allocation2 + $0xb0] sm:$0xff] 0.0
    %41 = vst [vmem:[#allocation2 + $0xb8] sm:$0xff] 0.0
    %42 = vst [vmem:[#allocation2 + $0xc0] sm:$0xff] 0.0
    %43 = vst [vmem:[#allocation2 + $0xc8] sm:$0xff] 0.0
    %44 = vst [vmem:[#allocation2 + $0xd0] sm:$0xff] 0.0
    %45 = vst [vmem:[#allocation2 + $0xd8] sm:$0xff] 0.0
    %46 = vst [vmem:[#allocation2 + $0xe0] sm:$0xff] 0.0
    %47 = vst [vmem:[#allocation2 + $0xe8] sm:$0xff] 0.0
    %48 = vst [vmem:[#allocation2 + $0xf0] sm:$0xff] 0.0
    %49 = vst [vmem:[#allocation2 + $0xf8] sm:$0xff] 0.0
  $region13: #{gcn_align_forward.13} parent=0 // pred_fallthru
    _
  %s50 = smul.u32 0, 128
  %s51 = sshra.s32 %s50, 3
  %s52 = sand.u32 %s50, 7
  %s53 = smul.u32 %s51, 2
  %s54 = smul.addr %s53, 4
  %s55 = scalar_lea.vmem %s1, %s54
  %v56 = vld [vmem:[%s55] sm:$0xff]
  %v57 = vld [vmem:[%s55 + $0x8] sm:$0xff]
  %v58 = vld [vmem:[%s55 + $0x10] sm:$0xff]
  %v59 = vld [vmem:[%s55 + $0x18] sm:$0xff]
  %v60 = vld [vmem:[%s55 + $0x20] sm:$0xff]
  %v61 = vld [vmem:[%s55 + $0x28] sm:$0xff]
  %v62 = vld [vmem:[%s55 + $0x30] sm:$0xff]
  %v63 = vld [vmem:[%s55 + $0x38] sm:$0xff]
  %v64 = vld [vmem:[%s55 + $0x40] sm:$0xff]
  %v65 = vld [vmem:[%s55 + $0x48] sm:$0xff]
  %v66 = vld [vmem:[%s55 + $0x50] sm:$0xff]
  %v67 = vld [vmem:[%s55 + $0x58] sm:$0xff]
  %v68 = vld [vmem:[%s55 + $0x60] sm:$0xff]
  %v69 = vld [vmem:[%s55 + $0x68] sm:$0xff]
  %v70 = vld [vmem:[%s55 + $0x70] sm:$0xff]
  %v71 = vld [vmem:[%s55 + $0x78] sm:$0xff]
  %v72 = vld [vmem:[#allocation2] sm:$0xff]
  %v73 = vld [vmem:[#allocation2 + $0x8] sm:$0xff]
  %v74 = vld [vmem:[#allocation2 + $0x10] sm:$0xff]
  %v75 = vld [vmem:[#allocation2 + $0x18] sm:$0xff]
  %v76 = vld [vmem:[#allocation2 + $0x20] sm:$0xff]
  %v77 = vld [vmem:[#allocation2 + $0x28] sm:$0xff]
  %v78 = vld [vmem:[#allocation2 + $0x30] sm:$0xff]
  %v79 = vld [vmem:[#allocation2 + $0x38] sm:$0xff]
  %v80 = vld [vmem:[#allocation2 + $0x40] sm:$0xff]
  %v81 = vld [vmem:[#allocation2 + $0x48] sm:$0xff]
  %v82 = vld [vmem:[#allocation2 + $0x50] sm:$0xff]
  %v83 = vld [vmem:[#allocation2 + $0x58] sm:$0xff]
  %v84 = vld [vmem:[#allocation2 + $0x60] sm:$0xff]
  %v85 = vld [vmem:[#allocation2 + $0x68] sm:$0xff]
  %v86 = vld [vmem:[#allocation2 + $0x70] sm:$0xff]
  %v87 = vld [vmem:[#allocation2 + $0x78] sm:$0xff]
  %v88 = vld [vmem:[#allocation2 + $0x80] sm:$0xff]
  %v89 = vld [vmem:[#allocation2 + $0x88] sm:$0xff]
  %v90 = vld [vmem:[#allocation2 + $0x90] sm:$0xff]
  %v91 = vld [vmem:[#allocation2 + $0x98] sm:$0xff]
  %v92 = vld [vmem:[#allocation2 + $0xa0] sm:$0xff]
  %v93 = vld [vmem:[#allocation2 + $0xa8] sm:$0xff]
  %v94 = vld [vmem:[#allocation2 + $0xb0] sm:$0xff]
  %v95 = vld [vmem:[#allocation2 + $0xb8] sm:$0xff]
  %v96 = vld [vmem:[#allocation2 + $0xc0] sm:$0xff]
  %v97 = vld [vmem:[#allocation2 + $0xc8] sm:$0xff]
  %v98 = vld [vmem:[#allocation2 + $0xd0] sm:$0xff]
  %v99 = vld [vmem:[#allocation2 + $0xd8] sm:$0xff]
  %v100 = vld [vmem:[#allocation2 + $0xe0] sm:$0xff]
  %v101 = vld [vmem:[#allocation2 + $0xe8] sm:$0xff]
  %v102 = vld [vmem:[#allocation2 + $0xf0] sm:$0xff]
  %v103 = vld [vmem:[#allocation2 + $0xf8] sm:$0xff]
  %v104 = vld [vmem:[%s0] sm:$0xf]
  %v105 = vld [vmem:[%s0 + $0x4] sm:$0xf]
  %v106 = vld [vmem:[%s0 + $0x8] sm:$0xf]
  %v107 = vld [vmem:[%s0 + $0xc] sm:$0xf]
  %v108 = vld [vmem:[%s0 + $0x10] sm:$0xf]
  %v109 = vld [vmem:[%s0 + $0x14] sm:$0xf]
  %v110 = vld [vmem:[%s0 + $0x18] sm:$0xf]
  %v111 = vld [vmem:[%s0 + $0x1c] sm:$0xf]
  %v112 = vld [vmem:[%s0 + $0x20] sm:$0xf]
  %v113 = vld [vmem:[%s0 + $0x24] sm:$0xf]
  %v114 = vld [vmem:[%s0 + $0x28] sm:$0xf]
  %v115 = vld [vmem:[%s0 + $0x2c] sm:$0xf]
  %v116 = vld [vmem:[%s0 + $0x30] sm:$0xf]
  %v117 = vld [vmem:[%s0 + $0x34] sm:$0xf]
  %v118 = vld [vmem:[%s0 + $0x38] sm:$0xf]
  %v119 = vld [vmem:[%s0 + $0x3c] sm:$0xf]
  %v136 = vunpack.c.l.b16 %v104
  %v137 = vunpack.c.l.b16 %v105
  %v138 = vunpack.c.l.b16 %v106
  %v139 = vunpack.c.l.b16 %v107
  %v140 = vunpack.c.l.b16 %v108
  %v141 = vunpack.c.l.b16 %v109
  %v142 = vunpack.c.l.b16 %v110
  %v143 = vunpack.c.l.b16 %v111
  %v144 = vunpack.c.l.b16 %v112
  %v145 = vunpack.c.l.b16 %v113
  %v146 = vunpack.c.l.b16 %v114
  %v147 = vunpack.c.l.b16 %v115
  %v148 = vunpack.c.l.b16 %v116
  %v149 = vunpack.c.l.b16 %v117
  %v150 = vunpack.c.l.b16 %v118
  %v151 = vunpack.c.l.b16 %v119
  %v152 = vpack.c.b16 %v137, %v136
  %v153 = vpack.c.b16 %v139, %v138
  %v154 = vpack.c.b16 %v141, %v140
  %v155 = vpack.c.b16 %v143, %v142
  %v156 = vpack.c.b16 %v145, %v144
  %v157 = vpack.c.b16 %v147, %v146
  %v158 = vpack.c.b16 %v149, %v148
  %v159 = vpack.c.b16 %v151, %v150
  %v184 = vunpack.c.l.b16 %v56
  %v185 = vunpack.c.h.b16 %v56
  %v186 = vunpack.c.l.b16 %v57
  %v187 = vunpack.c.h.b16 %v57
  %v188 = vunpack.c.l.b16 %v58
  %v189 = vunpack.c.h.b16 %v58
  %v190 = vunpack.c.l.b16 %v59
  %v191 = vunpack.c.h.b16 %v59
  %v192 = vunpack.c.l.b16 %v60
  %v193 = vunpack.c.h.b16 %v60
  %v194 = vunpack.c.l.b16 %v61
  %v195 = vunpack.c.h.b16 %v61
  %v196 = vunpack.c.l.b16 %v62
  %v197 = vunpack.c.h.b16 %v62
  %v198 = vunpack.c.l.b16 %v63
  %v199 = vunpack.c.h.b16 %v63
  %v200 = vunpack.c.l.b16 %v64
  %v201 = vunpack.c.h.b16 %v64
  %v202 = vunpack.c.l.b16 %v65
  %v203 = vunpack.c.h.b16 %v65
  %v204 = vunpack.c.l.b16 %v66
  %v205 = vunpack.c.h.b16 %v66
  %v206 = vunpack.c.l.b16 %v67
  %v207 = vunpack.c.h.b16 %v67
  %v208 = vunpack.c.l.b16 %v68
  %v209 = vunpack.c.h.b16 %v68
  %v210 = vunpack.c.l.b16 %v69
  %v211 = vunpack.c.h.b16 %v69
  %v212 = vunpack.c.l.b16 %v70
  %v213 = vunpack.c.h.b16 %v70
  %v214 = vunpack.c.l.b16 %v71
  %v215 = vunpack.c.h.b16 %v71
  %v216 = vpack.c.b16 %v186, %v184
  %v217 = vpack.c.b16 %v187, %v185
  %v218 = vpack.c.b16 %v190, %v188
  %v219 = vpack.c.b16 %v191, %v189
  %v220 = vpack.c.b16 %v194, %v192
  %v221 = vpack.c.b16 %v195, %v193
  %v222 = vpack.c.b16 %v198, %v196
  %v223 = vpack.c.b16 %v199, %v197
  %v224 = vpack.c.b16 %v202, %v200
  %v225 = vpack.c.b16 %v203, %v201
  %v226 = vpack.c.b16 %v206, %v204
  %v227 = vpack.c.b16 %v207, %v205
  %v228 = vpack.c.b16 %v210, %v208
  %v229 = vpack.c.b16 %v211, %v209
  %v230 = vpack.c.b16 %v214, %v212
  %v231 = vpack.c.b16 %v215, %v213
  %248 = vmatprep.subr.bf16.mxu0 %v217
  %249 = vmatpush1.bf16.msra.mxu0 %v216
  %250 = vmatprep.subr.bf16.mxu0 %v219
  %251 = vmatpush1.bf16.msra.mxu0 %v218
  %252 = vmatprep.subr.bf16.mxu0 %v221
  %253 = vmatpush1.bf16.msra.mxu0 %v220
  %254 = vmatprep.subr.bf16.mxu0 %v223
  %255 = vmatpush1.bf16.msra.mxu0 %v222
  %256 = vmatprep.subr.bf16.mxu0 %v225
  %257 = vmatpush1.bf16.msra.mxu0 %v224
  %258 = vmatprep.subr.bf16.mxu0 %v227
  %259 = vmatpush1.bf16.msra.mxu0 %v226
  %260 = vmatprep.subr.bf16.mxu0 %v229
  %261 = vmatpush1.bf16.msra.mxu0 %v228
  %262 = vmatprep.subr.bf16.mxu0 %v231
  %263 = vmatpush1.bf16.msra.mxu0 %v230
  %264 = vmatprep.subr.bf16.mxu0 0
  %265 = vmatpush1.bf16.msra.mxu0 0
  %266 = vmatprep.subr.bf16.mxu0 0
  %267 = vmatpush1.bf16.msra.mxu0 0
  %268 = vmatprep.subr.bf16.mxu0 0
  %269 = vmatpush1.bf16.msra.mxu0 0
  %270 = vmatprep.subr.bf16.mxu0 0
  %271 = vmatpush1.bf16.msra.mxu0 0
  %272 = vmatprep.subr.bf16.mxu0 0
  %273 = vmatpush1.bf16.msra.mxu0 0
  %274 = vmatprep.subr.bf16.mxu0 0
  %275 = vmatpush1.bf16.msra.mxu0 0
  %276 = vmatprep.subr.bf16.mxu0 0
  %277 = vmatpush1.bf16.msra.mxu0 0
  %278 = vmatprep.subr.bf16.mxu0 0
  %279 = vmatpush1.bf16.msra.mxu0 0
  %280 = vmatprep.mubr.bf16.mxu0 0
  %281 = vmatmul.mubr.bf16.gmra.mrb[0].mxu0 %v152
  %v282 = vpop.f32.mrb[0].mxu0
  %v283 = vadd.f32 0.0, %v282
  %v284 = vpop.f32.mrb[0].mxu0
  %v285 = vadd.f32 0.0, %v284
  %v286 = vpop.f32.mrb[0].mxu0
  %v287 = vadd.f32 0.0, %v286
  %v288 = vpop.f32.mrb[0].mxu0
  %v289 = vadd.f32 0.0, %v288
  %290 = vmatprep.mubr.bf16.mxu0 0
  %291 = vmatmul.mubr.bf16.gmra.mrb[0].mxu0 %v153
  %v292 = vpop.f32.mrb[0].mxu0
  %v293 = vadd.f32 0.0, %v292
  %v294 = vpop.f32.mrb[0].mxu0
  %v295 = vadd.f32 0.0, %v294
  %v296 = vpop.f32.mrb[0].mxu0
  %v297 = vadd.f32 0.0, %v296
  %v298 = vpop.f32.mrb[0].mxu0
  %v299 = vadd.f32 0.0, %v298
  %300 = vmatprep.mubr.bf16.mxu0 0
  %301 = vmatmul.mubr.bf16.gmra.mrb[0].mxu0 %v154
  %v302 = vpop.f32.mrb[0].mxu0
  %v303 = vadd.f32 0.0, %v302
  %v304 = vpop.f32.mrb[0].mxu0
  %v305 = vadd.f32 0.0, %v304
  %v306 = vpop.f32.mrb[0].mxu0
  %v307 = vadd.f32 0.0, %v306
  %v308 = vpop.f32.mrb[0].mxu0
  %v309 = vadd.f32 0.0, %v308
  %310 = vmatprep.mubr.bf16.mxu0 0
  %311 = vmatmul.mubr.bf16.gmra.mrb[0].mxu0 %v155
  %v312 = vpop.f32.mrb[0].mxu0
  %v313 = vadd.f32 0.0, %v312
  %v314 = vpop.f32.mrb[0].mxu0
  %v315 = vadd.f32 0.0, %v314
  %v316 = vpop.f32.mrb[0].mxu0
  %v317 = vadd.f32 0.0, %v316
  %v318 = vpop.f32.mrb[0].mxu0
  %v319 = vadd.f32 0.0, %v318
  %320 = vmatprep.mubr.bf16.mxu0 0
  %321 = vmatmul.mubr.bf16.gmra.mrb[0].mxu0 %v156
  %v322 = vpop.f32.mrb[0].mxu0
  %v323 = vadd.f32 0.0, %v322
  %v324 = vpop.f32.mrb[0].mxu0
  %v325 = vadd.f32 0.0, %v324
  %v326 = vpop.f32.mrb[0].mxu0
  %v327 = vadd.f32 0.0, %v326
  %v328 = vpop.f32.mrb[0].mxu0
  %v329 = vadd.f32 0.0, %v328
  %330 = vmatprep.mubr.bf16.mxu0 0
  %331 = vmatmul.mubr.bf16.gmra.mrb[0].mxu0 %v157
  %v332 = vpop.f32.mrb[0].mxu0
  %v333 = vadd.f32 0.0, %v332
  %v334 = vpop.f32.mrb[0].mxu0
  %v335 = vadd.f32 0.0, %v334
  %v336 = vpop.f32.mrb[0].mxu0
  %v337 = vadd.f32 0.0, %v336
  %v338 = vpop.f32.mrb[0].mxu0
  %v339 = vadd.f32 0.0, %v338
  %340 = vmatprep.mubr.bf16.mxu0 0
  %341 = vmatmul.mubr.bf16.gmra.mrb[0].mxu0 %v158
  %v342 = vpop.f32.mrb[0].mxu0
  %v343 = vadd.f32 0.0, %v342
  %v344 = vpop.f32.mrb[0].mxu0
  %v345 = vadd.f32 0.0, %v344
  %v346 = vpop.f32.mrb[0].mxu0
  %v347 = vadd.f32 0.0, %v346
  %v348 = vpop.f32.mrb[0].mxu0
  %v349 = vadd.f32 0.0, %v348
  %350 = vmatprep.mubr.bf16.mxu0 0
  %351 = vmatmul.mubr.bf16.gmra.mrb[0].mxu0 %v159
  %v352 = vpop.f32.mrb[0].mxu0
  %v353 = vadd.f32 0.0, %v352
  %v354 = vpop.f32.mrb[0].mxu0
  %v355 = vadd.f32 0.0, %v354
  %v356 = vpop.f32.mrb[0].mxu0
  %v357 = vadd.f32 0.0, %v356
  %v358 = vpop.f32.mrb[0].mxu0
  %v359 = vadd.f32 0.0, %v358
  %360 = vdwg.mxu0
  %v361 = vadd.f32 %v72, %v283
  %v362 = vadd.f32 %v73, %v285
  %v363 = vadd.f32 %v74, %v287
  %v364 = vadd.f32 %v75, %v289
  %v365 = vadd.f32 %v76, %v293
  %v366 = vadd.f32 %v77, %v295
  %v367 = vadd.f32 %v78, %v297
  %v368 = vadd.f32 %v79, %v299
  %v369 = vadd.f32 %v80, %v303
  %v370 = vadd.f32 %v81, %v305
  %v371 = vadd.f32 %v82, %v307
  %v372 = vadd.f32 %v83, %v309
  %v373 = vadd.f32 %v84, %v313
  %v374 = vadd.f32 %v85, %v315
  %v375 = vadd.f32 %v86, %v317
  %v376 = vadd.f32 %v87, %v319
  %v377 = vadd.f32 %v88, %v323
  %v378 = vadd.f32 %v89, %v325
  %v379 = vadd.f32 %v90, %v327
  %v380 = vadd.f32 %v91, %v329
  %v381 = vadd.f32 %v92, %v333
  %v382 = vadd.f32 %v93, %v335
  %v383 = vadd.f32 %v94, %v337
  %v384 = vadd.f32 %v95, %v339
  %v385 = vadd.f32 %v96, %v343
  %v386 = vadd.f32 %v97, %v345
  %v387 = vadd.f32 %v98, %v347
  %v388 = vadd.f32 %v99, %v349
  %v389 = vadd.f32 %v100, %v353
  %v390 = vadd.f32 %v101, %v355
  %v391 = vadd.f32 %v102, %v357
  %v392 = vadd.f32 %v103, %v359
  %393 = vst [vmem:[#allocation2] sm:$0xff] %v361
  %394 = vst [vmem:[#allocation2 + $0x8] sm:$0xff] %v362
  %395 = vst [vmem:[#allocation2 + $0x10] sm:$0xff] %v363
  %396 = vst [vmem:[#allocation2 + $0x18] sm:$0xff] %v364
  %397 = vst [vmem:[#allocation2 + $0x20] sm:$0xff] %v365
  %398 = vst [vmem:[#allocation2 + $0x28] sm:$0xff] %v366
  %399 = vst [vmem:[#allocation2 + $0x30] sm:$0xff] %v367
  %400 = vst [vmem:[#allocation2 + $0x38] sm:$0xff] %v368
  %401 = vst [vmem:[#allocation2 + $0x40] sm:$0xff] %v369
  %402 = vst [vmem:[#allocation2 + $0x48] sm:$0xff] %v370
  %403 = vst [vmem:[#allocation2 + $0x50] sm:$0xff] %v371
  %404 = vst [vmem:[#allocation2 + $0x58] sm:$0xff] %v372
  %405 = vst [vmem:[#allocation2 + $0x60] sm:$0xff] %v373
  %406 = vst [vmem:[#allocation2 + $0x68] sm:$0xff] %v374
  %407 = vst [vmem:[#allocation2 + $0x70] sm:$0xff] %v375
  %408 = vst [vmem:[#allocation2 + $0x78] sm:$0xff] %v376
  %409 = vst [vmem:[#allocation2 + $0x80] sm:$0xff] %v377
  %410 = vst [vmem:[#allocation2 + $0x88] sm:$0xff] %v378
  %411 = vst [vmem:[#allocation2 + $0x90] sm:$0xff] %v379
  %412 = vst [vmem:[#allocation2 + $0x98] sm:$0xff] %v380
  %413 = vst [vmem:[#allocation2 + $0xa0] sm:$0xff] %v381
  %414 = vst [vmem:[#allocation2 + $0xa8] sm:$0xff] %v382
  %415 = vst [vmem:[#allocation2 + $0xb0] sm:$0xff] %v383
  %416 = vst [vmem:[#allocation2 + $0xb8] sm:$0xff] %v384
  %417 = vst [vmem:[#allocation2 + $0xc0] sm:$0xff] %v385
  %418 = vst [vmem:[#allocation2 + $0xc8] sm:$0xff] %v386
  %419 = vst [vmem:[#allocation2 + $0xd0] sm:$0xff] %v387
  %420 = vst [vmem:[#allocation2 + $0xd8] sm:$0xff] %v388
  %421 = vst [vmem:[#allocation2 + $0xe0] sm:$0xff] %v389
  %422 = vst [vmem:[#allocation2 + $0xe8] sm:$0xff] %v390
  %423 = vst [vmem:[#allocation2 + $0xf0] sm:$0xff] %v391
  %424 = vst [vmem:[#allocation2 + $0xf8] sm:$0xff] %v392
  // Predicated region
  $region14: #{gcn_align_forward.13} parent=0 // pred_check
    %p425 = pneg %p14
  $region15: #{gcn_align_forward.13} parent=0 // pred_check_branch
    %427 = sbr.rel (%p425) target = $region17
  $region16: #{gcn_align_forward.13} parent=0 // pred_region
    %v428 = vld [vmem:[#allocation2] sm:$0xff]
    %v429 = vld [vmem:[#allocation2 + $0x8] sm:$0xff]
    %v430 = vld [vmem:[#allocation2 + $0x10] sm:$0xff]
    %v431 = vld [vmem:[#allocation2 + $0x18] sm:$0xff]
    %v432 = vld [vmem:[#allocation2 + $0x20] sm:$0xff]
    %v433 = vld [vmem:[#allocation2 + $0x28] sm:$0xff]
    %v434 = vld [vmem:[#allocation2 + $0x30] sm:$0xff]
    %v435 = vld [vmem:[#allocation2 + $0x38] sm:$0xff]
    %v436 = vld [vmem:[#allocation2 + $0x40] sm:$0xff]
    %v437 = vld [vmem:[#allocation2 + $0x48] sm:$0xff]
    %v438 = vld [vmem:[#allocation2 + $0x50] sm:$0xff]
    %v439 = vld [vmem:[#allocation2 + $0x58] sm:$0xff]
    %v440 = vld [vmem:[#allocation2 + $0x60] sm:$0xff]
    %v441 = vld [vmem:[#allocation2 + $0x68] sm:$0xff]
    %v442 = vld [vmem:[#allocation2 + $0x70] sm:$0xff]
    %v443 = vld [vmem:[#allocation2 + $0x78] sm:$0xff]
    %v444 = vld [vmem:[#allocation2 + $0x80] sm:$0xff]
    %v445 = vld [vmem:[#allocation2 + $0x88] sm:$0xff]
    %v446 = vld [vmem:[#allocation2 + $0x90] sm:$0xff]
    %v447 = vld [vmem:[#allocation2 + $0x98] sm:$0xff]
    %v448 = vld [vmem:[#allocation2 + $0xa0] sm:$0xff]
    %v449 = vld [vmem:[#allocation2 + $0xa8] sm:$0xff]
    %v450 = vld [vmem:[#allocation2 + $0xb0] sm:$0xff]
    %v451 = vld [vmem:[#allocation2 + $0xb8] sm:$0xff]
    %v452 = vld [vmem:[#allocation2 + $0xc0] sm:$0xff]
    %v453 = vld [vmem:[#allocation2 + $0xc8] sm:$0xff]
    %v454 = vld [vmem:[#allocation2 + $0xd0] sm:$0xff]
    %v455 = vld [vmem:[#allocation2 + $0xd8] sm:$0xff]
    %v456 = vld [vmem:[#allocation2 + $0xe0] sm:$0xff]
    %v457 = vld [vmem:[#allocation2 + $0xe8] sm:$0xff]
    %v458 = vld [vmem:[#allocation2 + $0xf0] sm:$0xff]
    %v459 = vld [vmem:[#allocation2 + $0xf8] sm:$0xff]
    %v460 = vmax.f32 %v428, 0.0
    %v461 = vmax.f32 %v429, 0.0
    %v462 = vmax.f32 %v430, 0.0
    %v463 = vmax.f32 %v431, 0.0
    %v464 = vmax.f32 %v432, 0.0
    %v465 = vmax.f32 %v433, 0.0
    %v466 = vmax.f32 %v434, 0.0
    %v467 = vmax.f32 %v435, 0.0
    %v468 = vmax.f32 %v436, 0.0
    %v469 = vmax.f32 %v437, 0.0
    %v470 = vmax.f32 %v438, 0.0
    %v471 = vmax.f32 %v439, 0.0
    %v472 = vmax.f32 %v440, 0.0
    %v473 = vmax.f32 %v441, 0.0
    %v474 = vmax.f32 %v442, 0.0
    %v475 = vmax.f32 %v443, 0.0
    %v476 = vmax.f32 %v444, 0.0
    %v477 = vmax.f32 %v445, 0.0
    %v478 = vmax.f32 %v446, 0.0
    %v479 = vmax.f32 %v447, 0.0
    %v480 = vmax.f32 %v448, 0.0
    %v481 = vmax.f32 %v449, 0.0
    %v482 = vmax.f32 %v450, 0.0
    %v483 = vmax.f32 %v451, 0.0
    %v484 = vmax.f32 %v452, 0.0
    %v485 = vmax.f32 %v453, 0.0
    %v486 = vmax.f32 %v454, 0.0
    %v487 = vmax.f32 %v455, 0.0
    %v488 = vmax.f32 %v456, 0.0
    %v489 = vmax.f32 %v457, 0.0
    %v490 = vmax.f32 %v458, 0.0
    %v491 = vmax.f32 %v459, 0.0
    %v492 = vpack.c.bf16 %v462, %v460
    %v493 = vpack.c.bf16 %v466, %v464
    %v494 = vpack.c.bf16 %v470, %v468
    %v495 = vpack.c.bf16 %v474, %v472
    %v496 = vpack.c.bf16 %v478, %v476
    %v497 = vpack.c.bf16 %v482, %v480
    %v498 = vpack.c.bf16 %v486, %v484
    %v499 = vpack.c.bf16 %v490, %v488
    %v508 = vunpack.c.l.b16 %v492
    %v509 = vunpack.c.h.b16 %v492
    %v510 = vunpack.c.l.b16 %v493
    %v511 = vunpack.c.h.b16 %v493
    %v512 = vunpack.c.l.b16 %v494
    %v513 = vunpack.c.h.b16 %v494
    %v514 = vunpack.c.l.b16 %v495
    %v515 = vunpack.c.h.b16 %v495
    %v516 = vunpack.c.l.b16 %v496
    %v517 = vunpack.c.h.b16 %v496
    %v518 = vunpack.c.l.b16 %v497
    %v519 = vunpack.c.h.b16 %v497
    %v520 = vunpack.c.l.b16 %v498
    %v521 = vunpack.c.h.b16 %v498
    %v522 = vunpack.c.l.b16 %v499
    %v523 = vunpack.c.h.b16 %v499
    %v524 = vpack.c.b16 %v508, %v508
    %v525 = vpack.c.b16 %v509, %v509
    %v526 = vpack.c.b16 %v510, %v510
    %v527 = vpack.c.b16 %v511, %v511
    %v528 = vpack.c.b16 %v512, %v512
    %v529 = vpack.c.b16 %v513, %v513
    %v530 = vpack.c.b16 %v514, %v514
    %v531 = vpack.c.b16 %v515, %v515
    %v532 = vpack.c.b16 %v516, %v516
    %v533 = vpack.c.b16 %v517, %v517
    %v534 = vpack.c.b16 %v518, %v518
    %v535 = vpack.c.b16 %v519, %v519
    %v536 = vpack.c.b16 %v520, %v520
    %v537 = vpack.c.b16 %v521, %v521
    %v538 = vpack.c.b16 %v522, %v522
    %v539 = vpack.c.b16 %v523, %v523
    %556 = vst [vmem:[%s2] sm:$0xf] %v524
    %557 = vst [vmem:[%s2 + $0x4] sm:$0xf] %v525
    %558 = vst [vmem:[%s2 + $0x8] sm:$0xf] %v526
    %559 = vst [vmem:[%s2 + $0xc] sm:$0xf] %v527
    %560 = vst [vmem:[%s2 + $0x10] sm:$0xf] %v528
    %561 = vst [vmem:[%s2 + $0x14] sm:$0xf] %v529
    %562 = vst [vmem:[%s2 + $0x18] sm:$0xf] %v530
    %563 = vst [vmem:[%s2 + $0x1c] sm:$0xf] %v531
    %564 = vst [vmem:[%s2 + $0x20] sm:$0xf] %v532
    %565 = vst [vmem:[%s2 + $0x24] sm:$0xf] %v533
    %566 = vst [vmem:[%s2 + $0x28] sm:$0xf] %v534
    %567 = vst [vmem:[%s2 + $0x2c] sm:$0xf] %v535
    %568 = vst [vmem:[%s2 + $0x30] sm:$0xf] %v536
    %569 = vst [vmem:[%s2 + $0x34] sm:$0xf] %v537
    %570 = vst [vmem:[%s2 + $0x38] sm:$0xf] %v538
    %571 = vst [vmem:[%s2 + $0x3c] sm:$0xf] %v539
    %v572 = vpack.c.bf16 %v463, %v461
    %v573 = vpack.c.bf16 %v467, %v465
    %v574 = vpack.c.bf16 %v471, %v469
    %v575 = vpack.c.bf16 %v475, %v473
    %v576 = vpack.c.bf16 %v479, %v477
    %v577 = vpack.c.bf16 %v483, %v481
    %v578 = vpack.c.bf16 %v487, %v485
    %v579 = vpack.c.bf16 %v491, %v489
    %v588 = vunpack.c.l.b16 %v572
    %v589 = vunpack.c.h.b16 %v572
    %v590 = vunpack.c.l.b16 %v573
    %v591 = vunpack.c.h.b16 %v573
    %v592 = vunpack.c.l.b16 %v574
    %v593 = vunpack.c.h.b16 %v574
    %v594 = vunpack.c.l.b16 %v575
    %v595 = vunpack.c.h.b16 %v575
    %v596 = vunpack.c.l.b16 %v576
    %v597 = vunpack.c.h.b16 %v576
    %v598 = vunpack.c.l.b16 %v577
    %v599 = vunpack.c.h.b16 %v577
    %v600 = vunpack.c.l.b16 %v578
    %v601 = vunpack.c.h.b16 %v578
    %v602 = vunpack.c.l.b16 %v579
    %v603 = vunpack.c.h.b16 %v579
    %v604 = vpack.c.b16 %v588, %v588
    %v605 = vpack.c.b16 %v589, %v589
    %v606 = vpack.c.b16 %v590, %v590
    %v607 = vpack.c.b16 %v591, %v591
    %v608 = vpack.c.b16 %v592, %v592
    %v609 = vpack.c.b16 %v593, %v593
    %v610 = vpack.c.b16 %v594, %v594
    %v611 = vpack.c.b16 %v595, %v595
    %v612 = vpack.c.b16 %v596, %v596
    %v613 = vpack.c.b16 %v597, %v597
    %v614 = vpack.c.b16 %v598, %v598
    %v615 = vpack.c.b16 %v599, %v599
    %v616 = vpack.c.b16 %v600, %v600
    %v617 = vpack.c.b16 %v601, %v601
    %v618 = vpack.c.b16 %v602, %v602
    %v619 = vpack.c.b16 %v603, %v603
    %636 = vst [vmem:[%s3] sm:$0xf] %v604
    %637 = vst [vmem:[%s3 + $0x4] sm:$0xf] %v605
    %638 = vst [vmem:[%s3 + $0x8] sm:$0xf] %v606
    %639 = vst [vmem:[%s3 + $0xc] sm:$0xf] %v607
    %640 = vst [vmem:[%s3 + $0x10] sm:$0xf] %v608
    %641 = vst [vmem:[%s3 + $0x14] sm:$0xf] %v609
    %642 = vst [vmem:[%s3 + $0x18] sm:$0xf] %v610
    %643 = vst [vmem:[%s3 + $0x1c] sm:$0xf] %v611
    %644 = vst [vmem:[%s3 + $0x20] sm:$0xf] %v612
    %645 = vst [vmem:[%s3 + $0x24] sm:$0xf] %v613
    %646 = vst [vmem:[%s3 + $0x28] sm:$0xf] %v614
    %647 = vst [vmem:[%s3 + $0x2c] sm:$0xf] %v615
    %648 = vst [vmem:[%s3 + $0x30] sm:$0xf] %v616
    %649 = vst [vmem:[%s3 + $0x34] sm:$0xf] %v617
    %650 = vst [vmem:[%s3 + $0x38] sm:$0xf] %v618
    %651 = vst [vmem:[%s3 + $0x3c] sm:$0xf] %v619
  $region17: #{gcn_align_forward.13} parent=0 // pred_fallthru
    _
  // Predicated region
  $region18: #{gcn_align_forward.13} parent=0 // pred_check
    _
  $region19: #{gcn_align_forward.13} parent=0 // pred_check_branch
    %653 = sbr.rel (0) target = $region21
  $region20: #{gcn_align_forward.13} parent=0 // pred_region
    _
  $region21: #{gcn_align_forward.13} parent=0 // pred_fallthru
    _
  // Predicated region
  $region22: #{gcn_align_forward.13} parent=0 // pred_check
    _
  $region23: #{gcn_align_forward.13} parent=0 // pred_check_branch
    %655 = sbr.rel (0) target = $region25
  $region24: #{gcn_align_forward.13} parent=0 // pred_region
    _
  $region25: #{gcn_align_forward.13} parent=0 // pred_fallthru
    _
  // Predicated region
  $region26: #{gcn_align_forward.13} parent=0 // pred_check
    _
  $region27: #{gcn_align_forward.13} parent=0 // pred_check_branch
    %657 = sbr.rel (0) target = $region29
  $region28: #{gcn_align_forward.13} parent=0 // pred_region
    _
  $region29: #{gcn_align_forward.13} parent=0 // pred_fallthru
    _
  // Predicated region
  $region30: #{gcn_align_forward.13} parent=0 // pred_check
    _
  $region31: #{gcn_align_forward.13} parent=0 // pred_check_branch
    %659 = sbr.rel (0) target = $region33
  $region32: #{gcn_align_forward.13} parent=0 // pred_region
    _
  $region33: #{gcn_align_forward.13} parent=0 // pred_fallthru
    _

</llo_original>
